<compile_context>
chip_gen: v7x
topology: tpu7x:2x2x1
jax: 0.10.0
libtpu: 0.0.40
codegen_flags: <defaults>
</compile_context>

<pallas_src>
import jax
import jax.numpy as jnp
from jax.experimental import pallas as pl
from jax.experimental.pallas import tpu as pltpu


def _repsrb_kernel(w_ref, b_ref, x_ref, top_ref, bot_ref, o_ref):
    """One (batch, row-tile) grid step of the reparameterized 3x3 conv.

    w_ref:   SMEM (Cout, Cin*9) f32  effective weights, tap index = kh*3 + kw
    b_ref:   SMEM (Cout,)       f32  effective bias
    x_ref:   VMEM (1, Cin, TH, W)    input row tile
    top_ref: VMEM (1, 1, Cin, W)     row above the tile (zeros at image top)
    bot_ref: VMEM (1, 1, Cin, W)     row below the tile (zeros at image bottom)
    o_ref:   VMEM (1, Cout, TH, W)   output row tile
    """
    _, Cin, TH, W = x_ref.shape
    Cout = o_ref.shape[1]

    # f32 accumulators (one per output channel), initialized with the bias.
    accs = [jnp.full((TH, W), b_ref[co], dtype=jnp.float32) for co in range(Cout)]

    zcol = jnp.zeros((TH + 2, 1), jnp.float32)

    for ci in range(Cin):
        # Rows -1 .. TH of this input channel: halo row, tile rows, halo row.
        xi = jnp.concatenate(
            [top_ref[0, 0, ci:ci + 1, :].astype(jnp.float32),
             x_ref[0, ci].astype(jnp.float32),
             bot_ref[0, 0, ci:ci + 1, :].astype(jnp.float32)],
            axis=0)                                              # (TH+2, W)

        # Horizontal (lane) shifts with the image's zero W-padding folded in.
        xi_l = jnp.concatenate([zcol, xi[:, :W - 1]], axis=1)    # x[.., w-1]
        xi_r = jnp.concatenate([xi[:, 1:], zcol], axis=1)        # x[.., w+1]
        shifted = (xi_l, xi, xi_r)                               # index by kw

        for kh in range(3):
            for kw in range(3):
                tap = shifted[kw][kh:kh + TH, :]                 # (TH, W)
                for co in range(Cout):
                    accs[co] = accs[co] + tap * w_ref[co, ci * 9 + kh * 3 + kw]

    for co in range(Cout):
        o_ref[0, co] = accs[co].astype(o_ref.dtype)


def _pick_row_tile(H, W, Cin, Cout, dtype_bytes=4, budget_bytes=1 << 20):
    """Largest multiple-of-8 divisor of H whose (in + out) tile fits the
    budget; falls back to the full height when no such divisor exists."""
    best = None
    for th in range(8, H + 1, 8):
        if H % th:
            continue
        if (Cin + Cout) * th * W * dtype_bytes <= budget_bytes or best is None:
            best = th
    if best is None:
        return H                      # H < 8 or no multiple-of-8 divisor
    # Prefer >= 2 row tiles when cheap so the grid can shard across 2 TCs (v7x).
    if best == H and H >= 16 and (H // 2) % 8 == 0:
        best = H // 2
    return best


@jax.jit
def repsrb_forward(x, k0, b0, scale, bias, mask):
    """RepSRB forward.  x: (N,Cin,H,W); k0: (Cout,Cin,1,1); b0,bias: (Cout,);
    scale: (Cout,1,1,1); mask: (Cout,1,3,3).  Returns (N,Cout,H,W)."""
    N, Cin, H, W = x.shape
    Cout = k0.shape[0]

    # --- reparameterize into a single effective 3x3 conv (tiny tensors) ---
    dww = (scale * mask)[:, 0, :, :].astype(jnp.float32)            # (Cout,3,3)
    k0m = k0[:, :, 0, 0].astype(jnp.float32)                        # (Cout,Cin)
    w_eff = (k0m[:, :, None] * dww.reshape(Cout, 1, 9)).reshape(Cout, Cin * 9)
    b_eff = (bias.astype(jnp.float32)
             + b0.astype(jnp.float32) * jnp.sum(dww, axis=(1, 2)))  # (Cout,)

    # --- row tiling + 1-row halos (gathers touch only 2 rows per tile) ---
    TH = _pick_row_tile(H, W, Cin, Cout)
    nT = H // TH

    zrow = jnp.zeros((N, Cin, 1, W), x.dtype)
    if nT > 1:
        top_rows = x[:, :, TH - 1:H - 1:TH, :]        # rows above tiles 1..nT-1
        bot_rows = x[:, :, TH:H:TH, :]                # rows below tiles 0..nT-2
        top = jnp.concatenate([zrow, top_rows], axis=2)   # (N, Cin, nT, W)
        bot = jnp.concatenate([bot_rows, zrow], axis=2)
    else:
        top = zrow
        bot = zrow
    top = jnp.transpose(top, (0, 2, 1, 3))            # (N, nT, Cin, W)  (tiny)
    bot = jnp.transpose(bot, (0, 2, 1, 3))

    return pl.pallas_call(
        _repsrb_kernel,
        out_shape=jax.ShapeDtypeStruct((N, Cout, H, W), x.dtype),
        grid_spec=pltpu.PrefetchScalarGridSpec(
            num_scalar_prefetch=0,
            grid=(N, nT),
            in_specs=[
                pl.BlockSpec(memory_space=pltpu.MemorySpace.SMEM),   # w_eff
                pl.BlockSpec(memory_space=pltpu.MemorySpace.SMEM),   # b_eff
                pl.BlockSpec((1, Cin, TH, W), lambda n, t: (n, 0, t, 0)),
                pl.BlockSpec((1, 1, Cin, W), lambda n, t: (n, t, 0, 0)),
                pl.BlockSpec((1, 1, Cin, W), lambda n, t: (n, t, 0, 0)),
            ],
            out_specs=pl.BlockSpec((1, Cout, TH, W), lambda n, t: (n, 0, t, 0)),
        ),
        compiler_params=pltpu.CompilerParams(
            dimension_semantics=("parallel", "parallel"),
            vmem_limit_bytes=32 * 1024 * 1024,
        ),
    )(w_eff, b_eff, x, top, bot)


def repsrb_reference(x, k0, b0, scale, bias, mask):
    """Pure-JAX reference matching the PyTorch forward (NCHW, two stages)."""
    Cout = k0.shape[0]
    y0 = jax.lax.conv_general_dilated(
        x, k0, (1, 1), 'VALID', dimension_numbers=('NCHW', 'OIHW', 'NCHW'))
    y0 = y0 + b0.reshape(1, -1, 1, 1)
    y0 = jnp.pad(y0, ((0, 0), (0, 0), (1, 1), (1, 1)))
    b0p = b0.reshape(1, -1, 1, 1)
    y0 = y0.at[:, :, 0:1, :].set(b0p)
    y0 = y0.at[:, :, -1:, :].set(b0p)
    y0 = y0.at[:, :, :, 0:1].set(b0p)
    y0 = y0.at[:, :, :, -1:].set(b0p)
    w = scale * mask                                            # (Cout,1,3,3)
    y1 = jax.lax.conv_general_dilated(
        y0, w, (1, 1), 'VALID', dimension_numbers=('NCHW', 'OIHW', 'NCHW'),
        feature_group_count=Cout)
    return y1 + bias.reshape(1, -1, 1, 1)


def make_params(key, inp_planes, out_planes, fre_type='sx'):
    k1, k2, k3, k4 = jax.random.split(key, 4)
    k0 = jax.random.normal(k1, (out_planes, inp_planes, 1, 1), jnp.float32) * 0.1
    b0 = jax.random.normal(k2, (out_planes,), jnp.float32) * 0.1
    scale = jax.random.normal(k3, (out_planes, 1, 1, 1), jnp.float32) * 0.001
    bias = jax.random.normal(k4, (out_planes,), jnp.float32) * 0.001
    sq = 2.0 ** 0.5
    if fre_type == 'sx':
        base = jnp.array([[1.0, 0.0, -1.0],
                          [sq, 0.0, -sq],
                          [1.0, 0.0, -1.0]], jnp.float32)
    elif fre_type == 'sy':
        base = jnp.array([[1.0, sq, 1.0],
                          [0.0, 0.0, 0.0],
                          [-1.0, -sq, -1.0]], jnp.float32)
    else:
        raise ValueError('the type of seqconv is not supported!')
    mask = jnp.broadcast_to(base, (out_planes, 1, 3, 3)).astype(jnp.float32)
    return k0, b0, scale, bias, mask


if __name__ == "__main__":
    key = jax.random.PRNGKey(0)

    configs = [
        dict(N=2, Cin=4, Cout=4, H=16, W=16, fre_type='sx'),   # 2 row tiles
        dict(N=1, Cin=3, Cout=5, H=8, W=24, fre_type='sy'),    # single tile
    ]
    for cfg in configs:
        key, kx, kp = jax.random.split(key, 3)
        x = jax.random.normal(kx, (cfg["N"], cfg["Cin"], cfg["H"], cfg["W"]),
                              jnp.float32)
        k0, b0, scale, bias, mask = make_params(kp, cfg["Cin"], cfg["Cout"],
                                                cfg["fre_type"])

        y = repsrb_forward(x, k0, b0, scale, bias, mask)
        jax.block_until_ready(y)

        y_ref = repsrb_reference(x, k0, b0, scale, bias, mask)
        assert y.shape == (cfg["N"], cfg["Cout"], cfg["H"], cfg["W"])
        assert jnp.allclose(y, y_ref, atol=1e-5, rtol=1e-5), (
            "max abs err = %e" % float(jnp.max(jnp.abs(y - y_ref))))

    print("KERNEL_OK")
</pallas_src>

<mosaic_0001>
module attributes {stable_mosaic.version = 11 : i64} {
  func.func @_repsrb_kernel(%arg0: i32, %arg1: i32, %arg2: memref<4x36xf32, #tpu.memory_space<smem>>, %arg3: memref<4xf32, #tpu.memory_space<smem>>, %arg4: memref<1x4x8x16xf32, #tpu.memory_space<vmem>>, %arg5: memref<1x1x4x16xf32, #tpu.memory_space<vmem>>, %arg6: memref<1x1x4x16xf32, #tpu.memory_space<vmem>>, %arg7: memref<1x4x8x16xf32, #tpu.memory_space<vmem>>) attributes {dimension_semantics = [#tpu.dimension_semantics<parallel>, #tpu.dimension_semantics<parallel>], iteration_bounds = array<i64: 2, 2>, scalar_prefetch = 0 : i64, scratch_operands = 0 : i64, tpu.core_type = #tpu.core_type<tc>, window_params = [{transform_indices = @transform_0, window_bounds = array<i64: 4, 36>}, {transform_indices = @transform_1, window_bounds = array<i64: 4>}, {transform_indices = @transform_2, window_bounds = array<i64: 1, 4, 8, 16>}, {transform_indices = @transform_3, window_bounds = array<i64: 1, 1, 4, 16>}, {transform_indices = @transform_4, window_bounds = array<i64: 1, 1, 4, 16>}, {transform_indices = @transform_5, window_bounds = array<i64: 1, 4, 8, 16>}]} {
    %c0 = arith.constant 0 : index
    %0 = memref.load %arg3[%c0] : memref<4xf32, #tpu.memory_space<smem>>
    %1 = vector.broadcast %0 : f32 to vector<8x16xf32>
    %c1 = arith.constant 1 : index
    %2 = memref.load %arg3[%c1] : memref<4xf32, #tpu.memory_space<smem>>
    %3 = vector.broadcast %2 : f32 to vector<8x16xf32>
    %c2 = arith.constant 2 : index
    %4 = memref.load %arg3[%c2] : memref<4xf32, #tpu.memory_space<smem>>
    %5 = vector.broadcast %4 : f32 to vector<8x16xf32>
    %c3 = arith.constant 3 : index
    %6 = memref.load %arg3[%c3] : memref<4xf32, #tpu.memory_space<smem>>
    %7 = vector.broadcast %6 : f32 to vector<8x16xf32>
    %cst = arith.constant 0.000000e+00 : f32
    %8 = vector.broadcast %cst : f32 to vector<10x1xf32>
    %c0_0 = arith.constant 0 : index
    %c0_1 = arith.constant 0 : index
    %c0_2 = arith.constant 0 : index
    %c0_3 = arith.constant 0 : index
    %9 = vector.load %arg5[%c0_0, %c0_1, %c0_2, %c0_3] : memref<1x1x4x16xf32, #tpu.memory_space<vmem>>, vector<1x1x1x16xf32>
    %10 = vector.shape_cast %9 : vector<1x1x1x16xf32> to vector<1x16xf32>
    %c0_4 = arith.constant 0 : index
    %c0_5 = arith.constant 0 : index
    %c0_6 = arith.constant 0 : index
    %c0_7 = arith.constant 0 : index
    %11 = vector.load %arg4[%c0_4, %c0_5, %c0_6, %c0_7] : memref<1x4x8x16xf32, #tpu.memory_space<vmem>>, vector<1x1x8x16xf32>
    %12 = vector.shape_cast %11 : vector<1x1x8x16xf32> to vector<8x16xf32>
    %c0_8 = arith.constant 0 : index
    %c0_9 = arith.constant 0 : index
    %c0_10 = arith.constant 0 : index
    %c0_11 = arith.constant 0 : index
    %13 = vector.load %arg6[%c0_8, %c0_9, %c0_10, %c0_11] : memref<1x1x4x16xf32, #tpu.memory_space<vmem>>, vector<1x1x1x16xf32>
    %14 = vector.shape_cast %13 : vector<1x1x1x16xf32> to vector<1x16xf32>
    %15 = tpu.concatenate %10, %12, %14 in 0 : vector<1x16xf32>, vector<8x16xf32>, vector<1x16xf32> -> vector<10x16xf32>
    %16 = vector.extract_strided_slice %15 {offsets = [0, 0], sizes = [10, 15], strides = [1, 1]} : vector<10x16xf32> to vector<10x15xf32>
    %17 = tpu.concatenate %8, %16 in 1 : vector<10x1xf32>, vector<10x15xf32> -> vector<10x16xf32>
    %18 = vector.extract_strided_slice %15 {offsets = [0, 1], sizes = [10, 15], strides = [1, 1]} : vector<10x16xf32> to vector<10x15xf32>
    %19 = tpu.concatenate %18, %8 in 1 : vector<10x15xf32>, vector<10x1xf32> -> vector<10x16xf32>
    %20 = vector.extract_strided_slice %17 {offsets = [0, 0], sizes = [8, 16], strides = [1, 1]} : vector<10x16xf32> to vector<8x16xf32>
    %c0_12 = arith.constant 0 : index
    %c0_13 = arith.constant 0 : index
    %21 = memref.load %arg2[%c0_12, %c0_13] : memref<4x36xf32, #tpu.memory_space<smem>>
    %22 = vector.broadcast %21 : f32 to vector<8x16xf32>
    %23 = arith.mulf %20, %22 : vector<8x16xf32>
    %24 = arith.addf %1, %23 : vector<8x16xf32>
    %c1_14 = arith.constant 1 : index
    %c0_15 = arith.constant 0 : index
    %25 = memref.load %arg2[%c1_14, %c0_15] : memref<4x36xf32, #tpu.memory_space<smem>>
    %26 = vector.broadcast %25 : f32 to vector<8x16xf32>
    %27 = arith.mulf %20, %26 : vector<8x16xf32>
    %28 = arith.addf %3, %27 : vector<8x16xf32>
    %c2_16 = arith.constant 2 : index
    %c0_17 = arith.constant 0 : index
    %29 = memref.load %arg2[%c2_16, %c0_17] : memref<4x36xf32, #tpu.memory_space<smem>>
    %30 = vector.broadcast %29 : f32 to vector<8x16xf32>
    %31 = arith.mulf %20, %30 : vector<8x16xf32>
    %32 = arith.addf %5, %31 : vector<8x16xf32>
    %c3_18 = arith.constant 3 : index
    %c0_19 = arith.constant 0 : index
    %33 = memref.load %arg2[%c3_18, %c0_19] : memref<4x36xf32, #tpu.memory_space<smem>>
    %34 = vector.broadcast %33 : f32 to vector<8x16xf32>
    %35 = arith.mulf %20, %34 : vector<8x16xf32>
    %36 = arith.addf %7, %35 : vector<8x16xf32>
    %37 = vector.extract_strided_slice %15 {offsets = [0, 0], sizes = [8, 16], strides = [1, 1]} : vector<10x16xf32> to vector<8x16xf32>
    %c0_20 = arith.constant 0 : index
    %c1_21 = arith.constant 1 : index
    %38 = memref.load %arg2[%c0_20, %c1_21] : memref<4x36xf32, #tpu.memory_space<smem>>
    %39 = vector.broadcast %38 : f32 to vector<8x16xf32>
    %40 = arith.mulf %37, %39 : vector<8x16xf32>
    %41 = arith.addf %24, %40 : vector<8x16xf32>
    %c1_22 = arith.constant 1 : index
    %c1_23 = arith.constant 1 : index
    %42 = memref.load %arg2[%c1_22, %c1_23] : memref<4x36xf32, #tpu.memory_space<smem>>
    %43 = vector.broadcast %42 : f32 to vector<8x16xf32>
    %44 = arith.mulf %37, %43 : vector<8x16xf32>
    %45 = arith.addf %28, %44 : vector<8x16xf32>
    %c2_24 = arith.constant 2 : index
    %c1_25 = arith.constant 1 : index
    %46 = memref.load %arg2[%c2_24, %c1_25] : memref<4x36xf32, #tpu.memory_space<smem>>
    %47 = vector.broadcast %46 : f32 to vector<8x16xf32>
    %48 = arith.mulf %37, %47 : vector<8x16xf32>
    %49 = arith.addf %32, %48 : vector<8x16xf32>
    %c3_26 = arith.constant 3 : index
    %c1_27 = arith.constant 1 : index
    %50 = memref.load %arg2[%c3_26, %c1_27] : memref<4x36xf32, #tpu.memory_space<smem>>
    %51 = vector.broadcast %50 : f32 to vector<8x16xf32>
    %52 = arith.mulf %37, %51 : vector<8x16xf32>
    %53 = arith.addf %36, %52 : vector<8x16xf32>
    %54 = vector.extract_strided_slice %19 {offsets = [0, 0], sizes = [8, 16], strides = [1, 1]} : vector<10x16xf32> to vector<8x16xf32>
    %c0_28 = arith.constant 0 : index
    %c2_29 = arith.constant 2 : index
    %55 = memref.load %arg2[%c0_28, %c2_29] : memref<4x36xf32, #tpu.memory_space<smem>>
    %56 = vector.broadcast %55 : f32 to vector<8x16xf32>
    %57 = arith.mulf %54, %56 : vector<8x16xf32>
    %58 = arith.addf %41, %57 : vector<8x16xf32>
    %c1_30 = arith.constant 1 : index
    %c2_31 = arith.constant 2 : index
    %59 = memref.load %arg2[%c1_30, %c2_31] : memref<4x36xf32, #tpu.memory_space<smem>>
    %60 = vector.broadcast %59 : f32 to vector<8x16xf32>
    %61 = arith.mulf %54, %60 : vector<8x16xf32>
    %62 = arith.addf %45, %61 : vector<8x16xf32>
    %c2_32 = arith.constant 2 : index
    %c2_33 = arith.constant 2 : index
    %63 = memref.load %arg2[%c2_32, %c2_33] : memref<4x36xf32, #tpu.memory_space<smem>>
    %64 = vector.broadcast %63 : f32 to vector<8x16xf32>
    %65 = arith.mulf %54, %64 : vector<8x16xf32>
    %66 = arith.addf %49, %65 : vector<8x16xf32>
    %c3_34 = arith.constant 3 : index
    %c2_35 = arith.constant 2 : index
    %67 = memref.load %arg2[%c3_34, %c2_35] : memref<4x36xf32, #tpu.memory_space<smem>>
    %68 = vector.broadcast %67 : f32 to vector<8x16xf32>
    %69 = arith.mulf %54, %68 : vector<8x16xf32>
    %70 = arith.addf %53, %69 : vector<8x16xf32>
    %71 = vector.extract_strided_slice %17 {offsets = [1, 0], sizes = [8, 16], strides = [1, 1]} : vector<10x16xf32> to vector<8x16xf32>
    %c0_36 = arith.constant 0 : index
    %c3_37 = arith.constant 3 : index
    %72 = memref.load %arg2[%c0_36, %c3_37] : memref<4x36xf32, #tpu.memory_space<smem>>
    %73 = vector.broadcast %72 : f32 to vector<8x16xf32>
    %74 = arith.mulf %71, %73 : vector<8x16xf32>
    %75 = arith.addf %58, %74 : vector<8x16xf32>
    %c1_38 = arith.constant 1 : index
    %c3_39 = arith.constant 3 : index
    %76 = memref.load %arg2[%c1_38, %c3_39] : memref<4x36xf32, #tpu.memory_space<smem>>
    %77 = vector.broadcast %76 : f32 to vector<8x16xf32>
    %78 = arith.mulf %71, %77 : vector<8x16xf32>
    %79 = arith.addf %62, %78 : vector<8x16xf32>
    %c2_40 = arith.constant 2 : index
    %c3_41 = arith.constant 3 : index
    %80 = memref.load %arg2[%c2_40, %c3_41] : memref<4x36xf32, #tpu.memory_space<smem>>
    %81 = vector.broadcast %80 : f32 to vector<8x16xf32>
    %82 = arith.mulf %71, %81 : vector<8x16xf32>
    %83 = arith.addf %66, %82 : vector<8x16xf32>
    %c3_42 = arith.constant 3 : index
    %c3_43 = arith.constant 3 : index
    %84 = memref.load %arg2[%c3_42, %c3_43] : memref<4x36xf32, #tpu.memory_space<smem>>
    %85 = vector.broadcast %84 : f32 to vector<8x16xf32>
    %86 = arith.mulf %71, %85 : vector<8x16xf32>
    %87 = arith.addf %70, %86 : vector<8x16xf32>
    %88 = vector.extract_strided_slice %15 {offsets = [1, 0], sizes = [8, 16], strides = [1, 1]} : vector<10x16xf32> to vector<8x16xf32>
    %c0_44 = arith.constant 0 : index
    %c4 = arith.constant 4 : index
    %89 = memref.load %arg2[%c0_44, %c4] : memref<4x36xf32, #tpu.memory_space<smem>>
    %90 = vector.broadcast %89 : f32 to vector<8x16xf32>
    %91 = arith.mulf %88, %90 : vector<8x16xf32>
    %92 = arith.addf %75, %91 : vector<8x16xf32>
    %c1_45 = arith.constant 1 : index
    %c4_46 = arith.constant 4 : index
    %93 = memref.load %arg2[%c1_45, %c4_46] : memref<4x36xf32, #tpu.memory_space<smem>>
    %94 = vector.broadcast %93 : f32 to vector<8x16xf32>
    %95 = arith.mulf %88, %94 : vector<8x16xf32>
    %96 = arith.addf %79, %95 : vector<8x16xf32>
    %c2_47 = arith.constant 2 : index
    %c4_48 = arith.constant 4 : index
    %97 = memref.load %arg2[%c2_47, %c4_48] : memref<4x36xf32, #tpu.memory_space<smem>>
    %98 = vector.broadcast %97 : f32 to vector<8x16xf32>
    %99 = arith.mulf %88, %98 : vector<8x16xf32>
    %100 = arith.addf %83, %99 : vector<8x16xf32>
    %c3_49 = arith.constant 3 : index
    %c4_50 = arith.constant 4 : index
    %101 = memref.load %arg2[%c3_49, %c4_50] : memref<4x36xf32, #tpu.memory_space<smem>>
    %102 = vector.broadcast %101 : f32 to vector<8x16xf32>
    %103 = arith.mulf %88, %102 : vector<8x16xf32>
    %104 = arith.addf %87, %103 : vector<8x16xf32>
    %105 = vector.extract_strided_slice %19 {offsets = [1, 0], sizes = [8, 16], strides = [1, 1]} : vector<10x16xf32> to vector<8x16xf32>
    %c0_51 = arith.constant 0 : index
    %c5 = arith.constant 5 : index
    %106 = memref.load %arg2[%c0_51, %c5] : memref<4x36xf32, #tpu.memory_space<smem>>
    %107 = vector.broadcast %106 : f32 to vector<8x16xf32>
    %108 = arith.mulf %105, %107 : vector<8x16xf32>
    %109 = arith.addf %92, %108 : vector<8x16xf32>
    %c1_52 = arith.constant 1 : index
    %c5_53 = arith.constant 5 : index
    %110 = memref.load %arg2[%c1_52, %c5_53] : memref<4x36xf32, #tpu.memory_space<smem>>
    %111 = vector.broadcast %110 : f32 to vector<8x16xf32>
    %112 = arith.mulf %105, %111 : vector<8x16xf32>
    %113 = arith.addf %96, %112 : vector<8x16xf32>
    %c2_54 = arith.constant 2 : index
    %c5_55 = arith.constant 5 : index
    %114 = memref.load %arg2[%c2_54, %c5_55] : memref<4x36xf32, #tpu.memory_space<smem>>
    %115 = vector.broadcast %114 : f32 to vector<8x16xf32>
    %116 = arith.mulf %105, %115 : vector<8x16xf32>
    %117 = arith.addf %100, %116 : vector<8x16xf32>
    %c3_56 = arith.constant 3 : index
    %c5_57 = arith.constant 5 : index
    %118 = memref.load %arg2[%c3_56, %c5_57] : memref<4x36xf32, #tpu.memory_space<smem>>
    %119 = vector.broadcast %118 : f32 to vector<8x16xf32>
    %120 = arith.mulf %105, %119 : vector<8x16xf32>
    %121 = arith.addf %104, %120 : vector<8x16xf32>
    %122 = vector.extract_strided_slice %17 {offsets = [2, 0], sizes = [8, 16], strides = [1, 1]} : vector<10x16xf32> to vector<8x16xf32>
    %c0_58 = arith.constant 0 : index
    %c6 = arith.constant 6 : index
    %123 = memref.load %arg2[%c0_58, %c6] : memref<4x36xf32, #tpu.memory_space<smem>>
    %124 = vector.broadcast %123 : f32 to vector<8x16xf32>
    %125 = arith.mulf %122, %124 : vector<8x16xf32>
    %126 = arith.addf %109, %125 : vector<8x16xf32>
    %c1_59 = arith.constant 1 : index
    %c6_60 = arith.constant 6 : index
    %127 = memref.load %arg2[%c1_59, %c6_60] : memref<4x36xf32, #tpu.memory_space<smem>>
    %128 = vector.broadcast %127 : f32 to vector<8x16xf32>
    %129 = arith.mulf %122, %128 : vector<8x16xf32>
    %130 = arith.addf %113, %129 : vector<8x16xf32>
    %c2_61 = arith.constant 2 : index
    %c6_62 = arith.constant 6 : index
    %131 = memref.load %arg2[%c2_61, %c6_62] : memref<4x36xf32, #tpu.memory_space<smem>>
    %132 = vector.broadcast %131 : f32 to vector<8x16xf32>
    %133 = arith.mulf %122, %132 : vector<8x16xf32>
    %134 = arith.addf %117, %133 : vector<8x16xf32>
    %c3_63 = arith.constant 3 : index
    %c6_64 = arith.constant 6 : index
    %135 = memref.load %arg2[%c3_63, %c6_64] : memref<4x36xf32, #tpu.memory_space<smem>>
    %136 = vector.broadcast %135 : f32 to vector<8x16xf32>
    %137 = arith.mulf %122, %136 : vector<8x16xf32>
    %138 = arith.addf %121, %137 : vector<8x16xf32>
    %139 = vector.extract_strided_slice %15 {offsets = [2, 0], sizes = [8, 16], strides = [1, 1]} : vector<10x16xf32> to vector<8x16xf32>
    %c0_65 = arith.constant 0 : index
    %c7 = arith.constant 7 : index
    %140 = memref.load %arg2[%c0_65, %c7] : memref<4x36xf32, #tpu.memory_space<smem>>
    %141 = vector.broadcast %140 : f32 to vector<8x16xf32>
    %142 = arith.mulf %139, %141 : vector<8x16xf32>
    %143 = arith.addf %126, %142 : vector<8x16xf32>
    %c1_66 = arith.constant 1 : index
    %c7_67 = arith.constant 7 : index
    %144 = memref.load %arg2[%c1_66, %c7_67] : memref<4x36xf32, #tpu.memory_space<smem>>
    %145 = vector.broadcast %144 : f32 to vector<8x16xf32>
    %146 = arith.mulf %139, %145 : vector<8x16xf32>
    %147 = arith.addf %130, %146 : vector<8x16xf32>
    %c2_68 = arith.constant 2 : index
    %c7_69 = arith.constant 7 : index
    %148 = memref.load %arg2[%c2_68, %c7_69] : memref<4x36xf32, #tpu.memory_space<smem>>
    %149 = vector.broadcast %148 : f32 to vector<8x16xf32>
    %150 = arith.mulf %139, %149 : vector<8x16xf32>
    %151 = arith.addf %134, %150 : vector<8x16xf32>
    %c3_70 = arith.constant 3 : index
    %c7_71 = arith.constant 7 : index
    %152 = memref.load %arg2[%c3_70, %c7_71] : memref<4x36xf32, #tpu.memory_space<smem>>
    %153 = vector.broadcast %152 : f32 to vector<8x16xf32>
    %154 = arith.mulf %139, %153 : vector<8x16xf32>
    %155 = arith.addf %138, %154 : vector<8x16xf32>
    %156 = vector.extract_strided_slice %19 {offsets = [2, 0], sizes = [8, 16], strides = [1, 1]} : vector<10x16xf32> to vector<8x16xf32>
    %c0_72 = arith.constant 0 : index
    %c8 = arith.constant 8 : index
    %157 = memref.load %arg2[%c0_72, %c8] : memref<4x36xf32, #tpu.memory_space<smem>>
    %158 = vector.broadcast %157 : f32 to vector<8x16xf32>
    %159 = arith.mulf %156, %158 : vector<8x16xf32>
    %160 = arith.addf %143, %159 : vector<8x16xf32>
    %c1_73 = arith.constant 1 : index
    %c8_74 = arith.constant 8 : index
    %161 = memref.load %arg2[%c1_73, %c8_74] : memref<4x36xf32, #tpu.memory_space<smem>>
    %162 = vector.broadcast %161 : f32 to vector<8x16xf32>
    %163 = arith.mulf %156, %162 : vector<8x16xf32>
    %164 = arith.addf %147, %163 : vector<8x16xf32>
    %c2_75 = arith.constant 2 : index
    %c8_76 = arith.constant 8 : index
    %165 = memref.load %arg2[%c2_75, %c8_76] : memref<4x36xf32, #tpu.memory_space<smem>>
    %166 = vector.broadcast %165 : f32 to vector<8x16xf32>
    %167 = arith.mulf %156, %166 : vector<8x16xf32>
    %168 = arith.addf %151, %167 : vector<8x16xf32>
    %c3_77 = arith.constant 3 : index
    %c8_78 = arith.constant 8 : index
    %169 = memref.load %arg2[%c3_77, %c8_78] : memref<4x36xf32, #tpu.memory_space<smem>>
    %170 = vector.broadcast %169 : f32 to vector<8x16xf32>
    %171 = arith.mulf %156, %170 : vector<8x16xf32>
    %172 = arith.addf %155, %171 : vector<8x16xf32>
    %c0_79 = arith.constant 0 : index
    %c0_80 = arith.constant 0 : index
    %c1_81 = arith.constant 1 : index
    %c0_82 = arith.constant 0 : index
    %173 = vector.load %arg5[%c0_79, %c0_80, %c1_81, %c0_82] : memref<1x1x4x16xf32, #tpu.memory_space<vmem>>, vector<1x1x1x16xf32>
    %174 = vector.shape_cast %173 : vector<1x1x1x16xf32> to vector<1x16xf32>
    %c0_83 = arith.constant 0 : index
    %c1_84 = arith.constant 1 : index
    %c0_85 = arith.constant 0 : index
    %c0_86 = arith.constant 0 : index
    %175 = vector.load %arg4[%c0_83, %c1_84, %c0_85, %c0_86] : memref<1x4x8x16xf32, #tpu.memory_space<vmem>>, vector<1x1x8x16xf32>
    %176 = vector.shape_cast %175 : vector<1x1x8x16xf32> to vector<8x16xf32>
    %c0_87 = arith.constant 0 : index
    %c0_88 = arith.constant 0 : index
    %c1_89 = arith.constant 1 : index
    %c0_90 = arith.constant 0 : index
    %177 = vector.load %arg6[%c0_87, %c0_88, %c1_89, %c0_90] : memref<1x1x4x16xf32, #tpu.memory_space<vmem>>, vector<1x1x1x16xf32>
    %178 = vector.shape_cast %177 : vector<1x1x1x16xf32> to vector<1x16xf32>
    %179 = tpu.concatenate %174, %176, %178 in 0 : vector<1x16xf32>, vector<8x16xf32>, vector<1x16xf32> -> vector<10x16xf32>
    %180 = vector.extract_strided_slice %179 {offsets = [0, 0], sizes = [10, 15], strides = [1, 1]} : vector<10x16xf32> to vector<10x15xf32>
    %181 = tpu.concatenate %8, %180 in 1 : vector<10x1xf32>, vector<10x15xf32> -> vector<10x16xf32>
    %182 = vector.extract_strided_slice %179 {offsets = [0, 1], sizes = [10, 15], strides = [1, 1]} : vector<10x16xf32> to vector<10x15xf32>
    %183 = tpu.concatenate %182, %8 in 1 : vector<10x15xf32>, vector<10x1xf32> -> vector<10x16xf32>
    %184 = vector.extract_strided_slice %181 {offsets = [0, 0], sizes = [8, 16], strides = [1, 1]} : vector<10x16xf32> to vector<8x16xf32>
    %c0_91 = arith.constant 0 : index
    %c9 = arith.constant 9 : index
    %185 = memref.load %arg2[%c0_91, %c9] : memref<4x36xf32, #tpu.memory_space<smem>>
    %186 = vector.broadcast %185 : f32 to vector<8x16xf32>
    %187 = arith.mulf %184, %186 : vector<8x16xf32>
    %188 = arith.addf %160, %187 : vector<8x16xf32>
    %c1_92 = arith.constant 1 : index
    %c9_93 = arith.constant 9 : index
    %189 = memref.load %arg2[%c1_92, %c9_93] : memref<4x36xf32, #tpu.memory_space<smem>>
    %190 = vector.broadcast %189 : f32 to vector<8x16xf32>
    %191 = arith.mulf %184, %190 : vector<8x16xf32>
    %192 = arith.addf %164, %191 : vector<8x16xf32>
    %c2_94 = arith.constant 2 : index
    %c9_95 = arith.constant 9 : index
    %193 = memref.load %arg2[%c2_94, %c9_95] : memref<4x36xf32, #tpu.memory_space<smem>>
    %194 = vector.broadcast %193 : f32 to vector<8x16xf32>
    %195 = arith.mulf %184, %194 : vector<8x16xf32>
    %196 = arith.addf %168, %195 : vector<8x16xf32>
    %c3_96 = arith.constant 3 : index
    %c9_97 = arith.constant 9 : index
    %197 = memref.load %arg2[%c3_96, %c9_97] : memref<4x36xf32, #tpu.memory_space<smem>>
    %198 = vector.broadcast %197 : f32 to vector<8x16xf32>
    %199 = arith.mulf %184, %198 : vector<8x16xf32>
    %200 = arith.addf %172, %199 : vector<8x16xf32>
    %201 = vector.extract_strided_slice %179 {offsets = [0, 0], sizes = [8, 16], strides = [1, 1]} : vector<10x16xf32> to vector<8x16xf32>
    %c0_98 = arith.constant 0 : index
    %c10 = arith.constant 10 : index
    %202 = memref.load %arg2[%c0_98, %c10] : memref<4x36xf32, #tpu.memory_space<smem>>
    %203 = vector.broadcast %202 : f32 to vector<8x16xf32>
    %204 = arith.mulf %201, %203 : vector<8x16xf32>
    %205 = arith.addf %188, %204 : vector<8x16xf32>
    %c1_99 = arith.constant 1 : index
    %c10_100 = arith.constant 10 : index
    %206 = memref.load %arg2[%c1_99, %c10_100] : memref<4x36xf32, #tpu.memory_space<smem>>
    %207 = vector.broadcast %206 : f32 to vector<8x16xf32>
    %208 = arith.mulf %201, %207 : vector<8x16xf32>
    %209 = arith.addf %192, %208 : vector<8x16xf32>
    %c2_101 = arith.constant 2 : index
    %c10_102 = arith.constant 10 : index
    %210 = memref.load %arg2[%c2_101, %c10_102] : memref<4x36xf32, #tpu.memory_space<smem>>
    %211 = vector.broadcast %210 : f32 to vector<8x16xf32>
    %212 = arith.mulf %201, %211 : vector<8x16xf32>
    %213 = arith.addf %196, %212 : vector<8x16xf32>
    %c3_103 = arith.constant 3 : index
    %c10_104 = arith.constant 10 : index
    %214 = memref.load %arg2[%c3_103, %c10_104] : memref<4x36xf32, #tpu.memory_space<smem>>
    %215 = vector.broadcast %214 : f32 to vector<8x16xf32>
    %216 = arith.mulf %201, %215 : vector<8x16xf32>
    %217 = arith.addf %200, %216 : vector<8x16xf32>
    %218 = vector.extract_strided_slice %183 {offsets = [0, 0], sizes = [8, 16], strides = [1, 1]} : vector<10x16xf32> to vector<8x16xf32>
    %c0_105 = arith.constant 0 : index
    %c11 = arith.constant 11 : index
    %219 = memref.load %arg2[%c0_105, %c11] : memref<4x36xf32, #tpu.memory_space<smem>>
    %220 = vector.broadcast %219 : f32 to vector<8x16xf32>
    %221 = arith.mulf %218, %220 : vector<8x16xf32>
    %222 = arith.addf %205, %221 : vector<8x16xf32>
    %c1_106 = arith.constant 1 : index
    %c11_107 = arith.constant 11 : index
    %223 = memref.load %arg2[%c1_106, %c11_107] : memref<4x36xf32, #tpu.memory_space<smem>>
    %224 = vector.broadcast %223 : f32 to vector<8x16xf32>
    %225 = arith.mulf %218, %224 : vector<8x16xf32>
    %226 = arith.addf %209, %225 : vector<8x16xf32>
    %c2_108 = arith.constant 2 : index
    %c11_109 = arith.constant 11 : index
    %227 = memref.load %arg2[%c2_108, %c11_109] : memref<4x36xf32, #tpu.memory_space<smem>>
    %228 = vector.broadcast %227 : f32 to vector<8x16xf32>
    %229 = arith.mulf %218, %228 : vector<8x16xf32>
    %230 = arith.addf %213, %229 : vector<8x16xf32>
    %c3_110 = arith.constant 3 : index
    %c11_111 = arith.constant 11 : index
    %231 = memref.load %arg2[%c3_110, %c11_111] : memref<4x36xf32, #tpu.memory_space<smem>>
    %232 = vector.broadcast %231 : f32 to vector<8x16xf32>
    %233 = arith.mulf %218, %232 : vector<8x16xf32>
    %234 = arith.addf %217, %233 : vector<8x16xf32>
    %235 = vector.extract_strided_slice %181 {offsets = [1, 0], sizes = [8, 16], strides = [1, 1]} : vector<10x16xf32> to vector<8x16xf32>
    %c0_112 = arith.constant 0 : index
    %c12 = arith.constant 12 : index
    %236 = memref.load %arg2[%c0_112, %c12] : memref<4x36xf32, #tpu.memory_space<smem>>
    %237 = vector.broadcast %236 : f32 to vector<8x16xf32>
    %238 = arith.mulf %235, %237 : vector<8x16xf32>
    %239 = arith.addf %222, %238 : vector<8x16xf32>
    %c1_113 = arith.constant 1 : index
    %c12_114 = arith.constant 12 : index
    %240 = memref.load %arg2[%c1_113, %c12_114] : memref<4x36xf32, #tpu.memory_space<smem>>
    %241 = vector.broadcast %240 : f32 to vector<8x16xf32>
    %242 = arith.mulf %235, %241 : vector<8x16xf32>
    %243 = arith.addf %226, %242 : vector<8x16xf32>
    %c2_115 = arith.constant 2 : index
    %c12_116 = arith.constant 12 : index
    %244 = memref.load %arg2[%c2_115, %c12_116] : memref<4x36xf32, #tpu.memory_space<smem>>
    %245 = vector.broadcast %244 : f32 to vector<8x16xf32>
    %246 = arith.mulf %235, %245 : vector<8x16xf32>
    %247 = arith.addf %230, %246 : vector<8x16xf32>
    %c3_117 = arith.constant 3 : index
    %c12_118 = arith.constant 12 : index
    %248 = memref.load %arg2[%c3_117, %c12_118] : memref<4x36xf32, #tpu.memory_space<smem>>
    %249 = vector.broadcast %248 : f32 to vector<8x16xf32>
    %250 = arith.mulf %235, %249 : vector<8x16xf32>
    %251 = arith.addf %234, %250 : vector<8x16xf32>
    %252 = vector.extract_strided_slice %179 {offsets = [1, 0], sizes = [8, 16], strides = [1, 1]} : vector<10x16xf32> to vector<8x16xf32>
    %c0_119 = arith.constant 0 : index
    %c13 = arith.constant 13 : index
    %253 = memref.load %arg2[%c0_119, %c13] : memref<4x36xf32, #tpu.memory_space<smem>>
    %254 = vector.broadcast %253 : f32 to vector<8x16xf32>
    %255 = arith.mulf %252, %254 : vector<8x16xf32>
    %256 = arith.addf %239, %255 : vector<8x16xf32>
    %c1_120 = arith.constant 1 : index
    %c13_121 = arith.constant 13 : index
    %257 = memref.load %arg2[%c1_120, %c13_121] : memref<4x36xf32, #tpu.memory_space<smem>>
    %258 = vector.broadcast %257 : f32 to vector<8x16xf32>
    %259 = arith.mulf %252, %258 : vector<8x16xf32>
    %260 = arith.addf %243, %259 : vector<8x16xf32>
    %c2_122 = arith.constant 2 : index
    %c13_123 = arith.constant 13 : index
    %261 = memref.load %arg2[%c2_122, %c13_123] : memref<4x36xf32, #tpu.memory_space<smem>>
    %262 = vector.broadcast %261 : f32 to vector<8x16xf32>
    %263 = arith.mulf %252, %262 : vector<8x16xf32>
    %264 = arith.addf %247, %263 : vector<8x16xf32>
    %c3_124 = arith.constant 3 : index
    %c13_125 = arith.constant 13 : index
    %265 = memref.load %arg2[%c3_124, %c13_125] : memref<4x36xf32, #tpu.memory_space<smem>>
    %266 = vector.broadcast %265 : f32 to vector<8x16xf32>
    %267 = arith.mulf %252, %266 : vector<8x16xf32>
    %268 = arith.addf %251, %267 : vector<8x16xf32>
    %269 = vector.extract_strided_slice %183 {offsets = [1, 0], sizes = [8, 16], strides = [1, 1]} : vector<10x16xf32> to vector<8x16xf32>
    %c0_126 = arith.constant 0 : index
    %c14 = arith.constant 14 : index
    %270 = memref.load %arg2[%c0_126, %c14] : memref<4x36xf32, #tpu.memory_space<smem>>
    %271 = vector.broadcast %270 : f32 to vector<8x16xf32>
    %272 = arith.mulf %269, %271 : vector<8x16xf32>
    %273 = arith.addf %256, %272 : vector<8x16xf32>
    %c1_127 = arith.constant 1 : index
    %c14_128 = arith.constant 14 : index
    %274 = memref.load %arg2[%c1_127, %c14_128] : memref<4x36xf32, #tpu.memory_space<smem>>
    %275 = vector.broadcast %274 : f32 to vector<8x16xf32>
    %276 = arith.mulf %269, %275 : vector<8x16xf32>
    %277 = arith.addf %260, %276 : vector<8x16xf32>
    %c2_129 = arith.constant 2 : index
    %c14_130 = arith.constant 14 : index
    %278 = memref.load %arg2[%c2_129, %c14_130] : memref<4x36xf32, #tpu.memory_space<smem>>
    %279 = vector.broadcast %278 : f32 to vector<8x16xf32>
    %280 = arith.mulf %269, %279 : vector<8x16xf32>
    %281 = arith.addf %264, %280 : vector<8x16xf32>
    %c3_131 = arith.constant 3 : index
    %c14_132 = arith.constant 14 : index
    %282 = memref.load %arg2[%c3_131, %c14_132] : memref<4x36xf32, #tpu.memory_space<smem>>
    %283 = vector.broadcast %282 : f32 to vector<8x16xf32>
    %284 = arith.mulf %269, %283 : vector<8x16xf32>
    %285 = arith.addf %268, %284 : vector<8x16xf32>
    %286 = vector.extract_strided_slice %181 {offsets = [2, 0], sizes = [8, 16], strides = [1, 1]} : vector<10x16xf32> to vector<8x16xf32>
    %c0_133 = arith.constant 0 : index
    %c15 = arith.constant 15 : index
    %287 = memref.load %arg2[%c0_133, %c15] : memref<4x36xf32, #tpu.memory_space<smem>>
    %288 = vector.broadcast %287 : f32 to vector<8x16xf32>
    %289 = arith.mulf %286, %288 : vector<8x16xf32>
    %290 = arith.addf %273, %289 : vector<8x16xf32>
    %c1_134 = arith.constant 1 : index
    %c15_135 = arith.constant 15 : index
    %291 = memref.load %arg2[%c1_134, %c15_135] : memref<4x36xf32, #tpu.memory_space<smem>>
    %292 = vector.broadcast %291 : f32 to vector<8x16xf32>
    %293 = arith.mulf %286, %292 : vector<8x16xf32>
    %294 = arith.addf %277, %293 : vector<8x16xf32>
    %c2_136 = arith.constant 2 : index
    %c15_137 = arith.constant 15 : index
    %295 = memref.load %arg2[%c2_136, %c15_137] : memref<4x36xf32, #tpu.memory_space<smem>>
    %296 = vector.broadcast %295 : f32 to vector<8x16xf32>
    %297 = arith.mulf %286, %296 : vector<8x16xf32>
    %298 = arith.addf %281, %297 : vector<8x16xf32>
    %c3_138 = arith.constant 3 : index
    %c15_139 = arith.constant 15 : index
    %299 = memref.load %arg2[%c3_138, %c15_139] : memref<4x36xf32, #tpu.memory_space<smem>>
    %300 = vector.broadcast %299 : f32 to vector<8x16xf32>
    %301 = arith.mulf %286, %300 : vector<8x16xf32>
    %302 = arith.addf %285, %301 : vector<8x16xf32>
    %303 = vector.extract_strided_slice %179 {offsets = [2, 0], sizes = [8, 16], strides = [1, 1]} : vector<10x16xf32> to vector<8x16xf32>
    %c0_140 = arith.constant 0 : index
    %c16 = arith.constant 16 : index
    %304 = memref.load %arg2[%c0_140, %c16] : memref<4x36xf32, #tpu.memory_space<smem>>
    %305 = vector.broadcast %304 : f32 to vector<8x16xf32>
    %306 = arith.mulf %303, %305 : vector<8x16xf32>
    %307 = arith.addf %290, %306 : vector<8x16xf32>
    %c1_141 = arith.constant 1 : index
    %c16_142 = arith.constant 16 : index
    %308 = memref.load %arg2[%c1_141, %c16_142] : memref<4x36xf32, #tpu.memory_space<smem>>
    %309 = vector.broadcast %308 : f32 to vector<8x16xf32>
    %310 = arith.mulf %303, %309 : vector<8x16xf32>
    %311 = arith.addf %294, %310 : vector<8x16xf32>
    %c2_143 = arith.constant 2 : index
    %c16_144 = arith.constant 16 : index
    %312 = memref.load %arg2[%c2_143, %c16_144] : memref<4x36xf32, #tpu.memory_space<smem>>
    %313 = vector.broadcast %312 : f32 to vector<8x16xf32>
    %314 = arith.mulf %303, %313 : vector<8x16xf32>
    %315 = arith.addf %298, %314 : vector<8x16xf32>
    %c3_145 = arith.constant 3 : index
    %c16_146 = arith.constant 16 : index
    %316 = memref.load %arg2[%c3_145, %c16_146] : memref<4x36xf32, #tpu.memory_space<smem>>
    %317 = vector.broadcast %316 : f32 to vector<8x16xf32>
    %318 = arith.mulf %303, %317 : vector<8x16xf32>
    %319 = arith.addf %302, %318 : vector<8x16xf32>
    %320 = vector.extract_strided_slice %183 {offsets = [2, 0], sizes = [8, 16], strides = [1, 1]} : vector<10x16xf32> to vector<8x16xf32>
    %c0_147 = arith.constant 0 : index
    %c17 = arith.constant 17 : index
    %321 = memref.load %arg2[%c0_147, %c17] : memref<4x36xf32, #tpu.memory_space<smem>>
    %322 = vector.broadcast %321 : f32 to vector<8x16xf32>
    %323 = arith.mulf %320, %322 : vector<8x16xf32>
    %324 = arith.addf %307, %323 : vector<8x16xf32>
    %c1_148 = arith.constant 1 : index
    %c17_149 = arith.constant 17 : index
    %325 = memref.load %arg2[%c1_148, %c17_149] : memref<4x36xf32, #tpu.memory_space<smem>>
    %326 = vector.broadcast %325 : f32 to vector<8x16xf32>
    %327 = arith.mulf %320, %326 : vector<8x16xf32>
    %328 = arith.addf %311, %327 : vector<8x16xf32>
    %c2_150 = arith.constant 2 : index
    %c17_151 = arith.constant 17 : index
    %329 = memref.load %arg2[%c2_150, %c17_151] : memref<4x36xf32, #tpu.memory_space<smem>>
    %330 = vector.broadcast %329 : f32 to vector<8x16xf32>
    %331 = arith.mulf %320, %330 : vector<8x16xf32>
    %332 = arith.addf %315, %331 : vector<8x16xf32>
    %c3_152 = arith.constant 3 : index
    %c17_153 = arith.constant 17 : index
    %333 = memref.load %arg2[%c3_152, %c17_153] : memref<4x36xf32, #tpu.memory_space<smem>>
    %334 = vector.broadcast %333 : f32 to vector<8x16xf32>
    %335 = arith.mulf %320, %334 : vector<8x16xf32>
    %336 = arith.addf %319, %335 : vector<8x16xf32>
    %c0_154 = arith.constant 0 : index
    %c0_155 = arith.constant 0 : index
    %c2_156 = arith.constant 2 : index
    %c0_157 = arith.constant 0 : index
    %337 = vector.load %arg5[%c0_154, %c0_155, %c2_156, %c0_157] : memref<1x1x4x16xf32, #tpu.memory_space<vmem>>, vector<1x1x1x16xf32>
    %338 = vector.shape_cast %337 : vector<1x1x1x16xf32> to vector<1x16xf32>
    %c0_158 = arith.constant 0 : index
    %c2_159 = arith.constant 2 : index
    %c0_160 = arith.constant 0 : index
    %c0_161 = arith.constant 0 : index
    %339 = vector.load %arg4[%c0_158, %c2_159, %c0_160, %c0_161] : memref<1x4x8x16xf32, #tpu.memory_space<vmem>>, vector<1x1x8x16xf32>
    %340 = vector.shape_cast %339 : vector<1x1x8x16xf32> to vector<8x16xf32>
    %c0_162 = arith.constant 0 : index
    %c0_163 = arith.constant 0 : index
    %c2_164 = arith.constant 2 : index
    %c0_165 = arith.constant 0 : index
    %341 = vector.load %arg6[%c0_162, %c0_163, %c2_164, %c0_165] : memref<1x1x4x16xf32, #tpu.memory_space<vmem>>, vector<1x1x1x16xf32>
    %342 = vector.shape_cast %341 : vector<1x1x1x16xf32> to vector<1x16xf32>
    %343 = tpu.concatenate %338, %340, %342 in 0 : vector<1x16xf32>, vector<8x16xf32>, vector<1x16xf32> -> vector<10x16xf32>
    %344 = vector.extract_strided_slice %343 {offsets = [0, 0], sizes = [10, 15], strides = [1, 1]} : vector<10x16xf32> to vector<10x15xf32>
    %345 = tpu.concatenate %8, %344 in 1 : vector<10x1xf32>, vector<10x15xf32> -> vector<10x16xf32>
    %346 = vector.extract_strided_slice %343 {offsets = [0, 1], sizes = [10, 15], strides = [1, 1]} : vector<10x16xf32> to vector<10x15xf32>
    %347 = tpu.concatenate %346, %8 in 1 : vector<10x15xf32>, vector<10x1xf32> -> vector<10x16xf32>
    %348 = vector.extract_strided_slice %345 {offsets = [0, 0], sizes = [8, 16], strides = [1, 1]} : vector<10x16xf32> to vector<8x16xf32>
    %c0_166 = arith.constant 0 : index
    %c18 = arith.constant 18 : index
    %349 = memref.load %arg2[%c0_166, %c18] : memref<4x36xf32, #tpu.memory_space<smem>>
    %350 = vector.broadcast %349 : f32 to vector<8x16xf32>
    %351 = arith.mulf %348, %350 : vector<8x16xf32>
    %352 = arith.addf %324, %351 : vector<8x16xf32>
    %c1_167 = arith.constant 1 : index
    %c18_168 = arith.constant 18 : index
    %353 = memref.load %arg2[%c1_167, %c18_168] : memref<4x36xf32, #tpu.memory_space<smem>>
    %354 = vector.broadcast %353 : f32 to vector<8x16xf32>
    %355 = arith.mulf %348, %354 : vector<8x16xf32>
    %356 = arith.addf %328, %355 : vector<8x16xf32>
    %c2_169 = arith.constant 2 : index
    %c18_170 = arith.constant 18 : index
    %357 = memref.load %arg2[%c2_169, %c18_170] : memref<4x36xf32, #tpu.memory_space<smem>>
    %358 = vector.broadcast %357 : f32 to vector<8x16xf32>
    %359 = arith.mulf %348, %358 : vector<8x16xf32>
    %360 = arith.addf %332, %359 : vector<8x16xf32>
    %c3_171 = arith.constant 3 : index
    %c18_172 = arith.constant 18 : index
    %361 = memref.load %arg2[%c3_171, %c18_172] : memref<4x36xf32, #tpu.memory_space<smem>>
    %362 = vector.broadcast %361 : f32 to vector<8x16xf32>
    %363 = arith.mulf %348, %362 : vector<8x16xf32>
    %364 = arith.addf %336, %363 : vector<8x16xf32>
    %365 = vector.extract_strided_slice %343 {offsets = [0, 0], sizes = [8, 16], strides = [1, 1]} : vector<10x16xf32> to vector<8x16xf32>
    %c0_173 = arith.constant 0 : index
    %c19 = arith.constant 19 : index
    %366 = memref.load %arg2[%c0_173, %c19] : memref<4x36xf32, #tpu.memory_space<smem>>
    %367 = vector.broadcast %366 : f32 to vector<8x16xf32>
    %368 = arith.mulf %365, %367 : vector<8x16xf32>
    %369 = arith.addf %352, %368 : vector<8x16xf32>
    %c1_174 = arith.constant 1 : index
    %c19_175 = arith.constant 19 : index
    %370 = memref.load %arg2[%c1_174, %c19_175] : memref<4x36xf32, #tpu.memory_space<smem>>
    %371 = vector.broadcast %370 : f32 to vector<8x16xf32>
    %372 = arith.mulf %365, %371 : vector<8x16xf32>
    %373 = arith.addf %356, %372 : vector<8x16xf32>
    %c2_176 = arith.constant 2 : index
    %c19_177 = arith.constant 19 : index
    %374 = memref.load %arg2[%c2_176, %c19_177] : memref<4x36xf32, #tpu.memory_space<smem>>
    %375 = vector.broadcast %374 : f32 to vector<8x16xf32>
    %376 = arith.mulf %365, %375 : vector<8x16xf32>
    %377 = arith.addf %360, %376 : vector<8x16xf32>
    %c3_178 = arith.constant 3 : index
    %c19_179 = arith.constant 19 : index
    %378 = memref.load %arg2[%c3_178, %c19_179] : memref<4x36xf32, #tpu.memory_space<smem>>
    %379 = vector.broadcast %378 : f32 to vector<8x16xf32>
    %380 = arith.mulf %365, %379 : vector<8x16xf32>
    %381 = arith.addf %364, %380 : vector<8x16xf32>
    %382 = vector.extract_strided_slice %347 {offsets = [0, 0], sizes = [8, 16], strides = [1, 1]} : vector<10x16xf32> to vector<8x16xf32>
    %c0_180 = arith.constant 0 : index
    %c20 = arith.constant 20 : index
    %383 = memref.load %arg2[%c0_180, %c20] : memref<4x36xf32, #tpu.memory_space<smem>>
    %384 = vector.broadcast %383 : f32 to vector<8x16xf32>
    %385 = arith.mulf %382, %384 : vector<8x16xf32>
    %386 = arith.addf %369, %385 : vector<8x16xf32>
    %c1_181 = arith.constant 1 : index
    %c20_182 = arith.constant 20 : index
    %387 = memref.load %arg2[%c1_181, %c20_182] : memref<4x36xf32, #tpu.memory_space<smem>>
    %388 = vector.broadcast %387 : f32 to vector<8x16xf32>
    %389 = arith.mulf %382, %388 : vector<8x16xf32>
    %390 = arith.addf %373, %389 : vector<8x16xf32>
    %c2_183 = arith.constant 2 : index
    %c20_184 = arith.constant 20 : index
    %391 = memref.load %arg2[%c2_183, %c20_184] : memref<4x36xf32, #tpu.memory_space<smem>>
    %392 = vector.broadcast %391 : f32 to vector<8x16xf32>
    %393 = arith.mulf %382, %392 : vector<8x16xf32>
    %394 = arith.addf %377, %393 : vector<8x16xf32>
    %c3_185 = arith.constant 3 : index
    %c20_186 = arith.constant 20 : index
    %395 = memref.load %arg2[%c3_185, %c20_186] : memref<4x36xf32, #tpu.memory_space<smem>>
    %396 = vector.broadcast %395 : f32 to vector<8x16xf32>
    %397 = arith.mulf %382, %396 : vector<8x16xf32>
    %398 = arith.addf %381, %397 : vector<8x16xf32>
    %399 = vector.extract_strided_slice %345 {offsets = [1, 0], sizes = [8, 16], strides = [1, 1]} : vector<10x16xf32> to vector<8x16xf32>
    %c0_187 = arith.constant 0 : index
    %c21 = arith.constant 21 : index
    %400 = memref.load %arg2[%c0_187, %c21] : memref<4x36xf32, #tpu.memory_space<smem>>
    %401 = vector.broadcast %400 : f32 to vector<8x16xf32>
    %402 = arith.mulf %399, %401 : vector<8x16xf32>
    %403 = arith.addf %386, %402 : vector<8x16xf32>
    %c1_188 = arith.constant 1 : index
    %c21_189 = arith.constant 21 : index
    %404 = memref.load %arg2[%c1_188, %c21_189] : memref<4x36xf32, #tpu.memory_space<smem>>
    %405 = vector.broadcast %404 : f32 to vector<8x16xf32>
    %406 = arith.mulf %399, %405 : vector<8x16xf32>
    %407 = arith.addf %390, %406 : vector<8x16xf32>
    %c2_190 = arith.constant 2 : index
    %c21_191 = arith.constant 21 : index
    %408 = memref.load %arg2[%c2_190, %c21_191] : memref<4x36xf32, #tpu.memory_space<smem>>
    %409 = vector.broadcast %408 : f32 to vector<8x16xf32>
    %410 = arith.mulf %399, %409 : vector<8x16xf32>
    %411 = arith.addf %394, %410 : vector<8x16xf32>
    %c3_192 = arith.constant 3 : index
    %c21_193 = arith.constant 21 : index
    %412 = memref.load %arg2[%c3_192, %c21_193] : memref<4x36xf32, #tpu.memory_space<smem>>
    %413 = vector.broadcast %412 : f32 to vector<8x16xf32>
    %414 = arith.mulf %399, %413 : vector<8x16xf32>
    %415 = arith.addf %398, %414 : vector<8x16xf32>
    %416 = vector.extract_strided_slice %343 {offsets = [1, 0], sizes = [8, 16], strides = [1, 1]} : vector<10x16xf32> to vector<8x16xf32>
    %c0_194 = arith.constant 0 : index
    %c22 = arith.constant 22 : index
    %417 = memref.load %arg2[%c0_194, %c22] : memref<4x36xf32, #tpu.memory_space<smem>>
    %418 = vector.broadcast %417 : f32 to vector<8x16xf32>
    %419 = arith.mulf %416, %418 : vector<8x16xf32>
    %420 = arith.addf %403, %419 : vector<8x16xf32>
    %c1_195 = arith.constant 1 : index
    %c22_196 = arith.constant 22 : index
    %421 = memref.load %arg2[%c1_195, %c22_196] : memref<4x36xf32, #tpu.memory_space<smem>>
    %422 = vector.broadcast %421 : f32 to vector<8x16xf32>
    %423 = arith.mulf %416, %422 : vector<8x16xf32>
    %424 = arith.addf %407, %423 : vector<8x16xf32>
    %c2_197 = arith.constant 2 : index
    %c22_198 = arith.constant 22 : index
    %425 = memref.load %arg2[%c2_197, %c22_198] : memref<4x36xf32, #tpu.memory_space<smem>>
    %426 = vector.broadcast %425 : f32 to vector<8x16xf32>
    %427 = arith.mulf %416, %426 : vector<8x16xf32>
    %428 = arith.addf %411, %427 : vector<8x16xf32>
    %c3_199 = arith.constant 3 : index
    %c22_200 = arith.constant 22 : index
    %429 = memref.load %arg2[%c3_199, %c22_200] : memref<4x36xf32, #tpu.memory_space<smem>>
    %430 = vector.broadcast %429 : f32 to vector<8x16xf32>
    %431 = arith.mulf %416, %430 : vector<8x16xf32>
    %432 = arith.addf %415, %431 : vector<8x16xf32>
    %433 = vector.extract_strided_slice %347 {offsets = [1, 0], sizes = [8, 16], strides = [1, 1]} : vector<10x16xf32> to vector<8x16xf32>
    %c0_201 = arith.constant 0 : index
    %c23 = arith.constant 23 : index
    %434 = memref.load %arg2[%c0_201, %c23] : memref<4x36xf32, #tpu.memory_space<smem>>
    %435 = vector.broadcast %434 : f32 to vector<8x16xf32>
    %436 = arith.mulf %433, %435 : vector<8x16xf32>
    %437 = arith.addf %420, %436 : vector<8x16xf32>
    %c1_202 = arith.constant 1 : index
    %c23_203 = arith.constant 23 : index
    %438 = memref.load %arg2[%c1_202, %c23_203] : memref<4x36xf32, #tpu.memory_space<smem>>
    %439 = vector.broadcast %438 : f32 to vector<8x16xf32>
    %440 = arith.mulf %433, %439 : vector<8x16xf32>
    %441 = arith.addf %424, %440 : vector<8x16xf32>
    %c2_204 = arith.constant 2 : index
    %c23_205 = arith.constant 23 : index
    %442 = memref.load %arg2[%c2_204, %c23_205] : memref<4x36xf32, #tpu.memory_space<smem>>
    %443 = vector.broadcast %442 : f32 to vector<8x16xf32>
    %444 = arith.mulf %433, %443 : vector<8x16xf32>
    %445 = arith.addf %428, %444 : vector<8x16xf32>
    %c3_206 = arith.constant 3 : index
    %c23_207 = arith.constant 23 : index
    %446 = memref.load %arg2[%c3_206, %c23_207] : memref<4x36xf32, #tpu.memory_space<smem>>
    %447 = vector.broadcast %446 : f32 to vector<8x16xf32>
    %448 = arith.mulf %433, %447 : vector<8x16xf32>
    %449 = arith.addf %432, %448 : vector<8x16xf32>
    %450 = vector.extract_strided_slice %345 {offsets = [2, 0], sizes = [8, 16], strides = [1, 1]} : vector<10x16xf32> to vector<8x16xf32>
    %c0_208 = arith.constant 0 : index
    %c24 = arith.constant 24 : index
    %451 = memref.load %arg2[%c0_208, %c24] : memref<4x36xf32, #tpu.memory_space<smem>>
    %452 = vector.broadcast %451 : f32 to vector<8x16xf32>
    %453 = arith.mulf %450, %452 : vector<8x16xf32>
    %454 = arith.addf %437, %453 : vector<8x16xf32>
    %c1_209 = arith.constant 1 : index
    %c24_210 = arith.constant 24 : index
    %455 = memref.load %arg2[%c1_209, %c24_210] : memref<4x36xf32, #tpu.memory_space<smem>>
    %456 = vector.broadcast %455 : f32 to vector<8x16xf32>
    %457 = arith.mulf %450, %456 : vector<8x16xf32>
    %458 = arith.addf %441, %457 : vector<8x16xf32>
    %c2_211 = arith.constant 2 : index
    %c24_212 = arith.constant 24 : index
    %459 = memref.load %arg2[%c2_211, %c24_212] : memref<4x36xf32, #tpu.memory_space<smem>>
    %460 = vector.broadcast %459 : f32 to vector<8x16xf32>
    %461 = arith.mulf %450, %460 : vector<8x16xf32>
    %462 = arith.addf %445, %461 : vector<8x16xf32>
    %c3_213 = arith.constant 3 : index
    %c24_214 = arith.constant 24 : index
    %463 = memref.load %arg2[%c3_213, %c24_214] : memref<4x36xf32, #tpu.memory_space<smem>>
    %464 = vector.broadcast %463 : f32 to vector<8x16xf32>
    %465 = arith.mulf %450, %464 : vector<8x16xf32>
    %466 = arith.addf %449, %465 : vector<8x16xf32>
    %467 = vector.extract_strided_slice %343 {offsets = [2, 0], sizes = [8, 16], strides = [1, 1]} : vector<10x16xf32> to vector<8x16xf32>
    %c0_215 = arith.constant 0 : index
    %c25 = arith.constant 25 : index
    %468 = memref.load %arg2[%c0_215, %c25] : memref<4x36xf32, #tpu.memory_space<smem>>
    %469 = vector.broadcast %468 : f32 to vector<8x16xf32>
    %470 = arith.mulf %467, %469 : vector<8x16xf32>
    %471 = arith.addf %454, %470 : vector<8x16xf32>
    %c1_216 = arith.constant 1 : index
    %c25_217 = arith.constant 25 : index
    %472 = memref.load %arg2[%c1_216, %c25_217] : memref<4x36xf32, #tpu.memory_space<smem>>
    %473 = vector.broadcast %472 : f32 to vector<8x16xf32>
    %474 = arith.mulf %467, %473 : vector<8x16xf32>
    %475 = arith.addf %458, %474 : vector<8x16xf32>
    %c2_218 = arith.constant 2 : index
    %c25_219 = arith.constant 25 : index
    %476 = memref.load %arg2[%c2_218, %c25_219] : memref<4x36xf32, #tpu.memory_space<smem>>
    %477 = vector.broadcast %476 : f32 to vector<8x16xf32>
    %478 = arith.mulf %467, %477 : vector<8x16xf32>
    %479 = arith.addf %462, %478 : vector<8x16xf32>
    %c3_220 = arith.constant 3 : index
    %c25_221 = arith.constant 25 : index
    %480 = memref.load %arg2[%c3_220, %c25_221] : memref<4x36xf32, #tpu.memory_space<smem>>
    %481 = vector.broadcast %480 : f32 to vector<8x16xf32>
    %482 = arith.mulf %467, %481 : vector<8x16xf32>
    %483 = arith.addf %466, %482 : vector<8x16xf32>
    %484 = vector.extract_strided_slice %347 {offsets = [2, 0], sizes = [8, 16], strides = [1, 1]} : vector<10x16xf32> to vector<8x16xf32>
    %c0_222 = arith.constant 0 : index
    %c26 = arith.constant 26 : index
    %485 = memref.load %arg2[%c0_222, %c26] : memref<4x36xf32, #tpu.memory_space<smem>>
    %486 = vector.broadcast %485 : f32 to vector<8x16xf32>
    %487 = arith.mulf %484, %486 : vector<8x16xf32>
    %488 = arith.addf %471, %487 : vector<8x16xf32>
    %c1_223 = arith.constant 1 : index
    %c26_224 = arith.constant 26 : index
    %489 = memref.load %arg2[%c1_223, %c26_224] : memref<4x36xf32, #tpu.memory_space<smem>>
    %490 = vector.broadcast %489 : f32 to vector<8x16xf32>
    %491 = arith.mulf %484, %490 : vector<8x16xf32>
    %492 = arith.addf %475, %491 : vector<8x16xf32>
    %c2_225 = arith.constant 2 : index
    %c26_226 = arith.constant 26 : index
    %493 = memref.load %arg2[%c2_225, %c26_226] : memref<4x36xf32, #tpu.memory_space<smem>>
    %494 = vector.broadcast %493 : f32 to vector<8x16xf32>
    %495 = arith.mulf %484, %494 : vector<8x16xf32>
    %496 = arith.addf %479, %495 : vector<8x16xf32>
    %c3_227 = arith.constant 3 : index
    %c26_228 = arith.constant 26 : index
    %497 = memref.load %arg2[%c3_227, %c26_228] : memref<4x36xf32, #tpu.memory_space<smem>>
    %498 = vector.broadcast %497 : f32 to vector<8x16xf32>
    %499 = arith.mulf %484, %498 : vector<8x16xf32>
    %500 = arith.addf %483, %499 : vector<8x16xf32>
    %c0_229 = arith.constant 0 : index
    %c0_230 = arith.constant 0 : index
    %c3_231 = arith.constant 3 : index
    %c0_232 = arith.constant 0 : index
    %501 = vector.load %arg5[%c0_229, %c0_230, %c3_231, %c0_232] : memref<1x1x4x16xf32, #tpu.memory_space<vmem>>, vector<1x1x1x16xf32>
    %502 = vector.shape_cast %501 : vector<1x1x1x16xf32> to vector<1x16xf32>
    %c0_233 = arith.constant 0 : index
    %c3_234 = arith.constant 3 : index
    %c0_235 = arith.constant 0 : index
    %c0_236 = arith.constant 0 : index
    %503 = vector.load %arg4[%c0_233, %c3_234, %c0_235, %c0_236] : memref<1x4x8x16xf32, #tpu.memory_space<vmem>>, vector<1x1x8x16xf32>
    %504 = vector.shape_cast %503 : vector<1x1x8x16xf32> to vector<8x16xf32>
    %c0_237 = arith.constant 0 : index
    %c0_238 = arith.constant 0 : index
    %c3_239 = arith.constant 3 : index
    %c0_240 = arith.constant 0 : index
    %505 = vector.load %arg6[%c0_237, %c0_238, %c3_239, %c0_240] : memref<1x1x4x16xf32, #tpu.memory_space<vmem>>, vector<1x1x1x16xf32>
    %506 = vector.shape_cast %505 : vector<1x1x1x16xf32> to vector<1x16xf32>
    %507 = tpu.concatenate %502, %504, %506 in 0 : vector<1x16xf32>, vector<8x16xf32>, vector<1x16xf32> -> vector<10x16xf32>
    %508 = vector.extract_strided_slice %507 {offsets = [0, 0], sizes = [10, 15], strides = [1, 1]} : vector<10x16xf32> to vector<10x15xf32>
    %509 = tpu.concatenate %8, %508 in 1 : vector<10x1xf32>, vector<10x15xf32> -> vector<10x16xf32>
    %510 = vector.extract_strided_slice %507 {offsets = [0, 1], sizes = [10, 15], strides = [1, 1]} : vector<10x16xf32> to vector<10x15xf32>
    %511 = tpu.concatenate %510, %8 in 1 : vector<10x15xf32>, vector<10x1xf32> -> vector<10x16xf32>
    %512 = vector.extract_strided_slice %509 {offsets = [0, 0], sizes = [8, 16], strides = [1, 1]} : vector<10x16xf32> to vector<8x16xf32>
    %c0_241 = arith.constant 0 : index
    %c27 = arith.constant 27 : index
    %513 = memref.load %arg2[%c0_241, %c27] : memref<4x36xf32, #tpu.memory_space<smem>>
    %514 = vector.broadcast %513 : f32 to vector<8x16xf32>
    %515 = arith.mulf %512, %514 : vector<8x16xf32>
    %516 = arith.addf %488, %515 : vector<8x16xf32>
    %c1_242 = arith.constant 1 : index
    %c27_243 = arith.constant 27 : index
    %517 = memref.load %arg2[%c1_242, %c27_243] : memref<4x36xf32, #tpu.memory_space<smem>>
    %518 = vector.broadcast %517 : f32 to vector<8x16xf32>
    %519 = arith.mulf %512, %518 : vector<8x16xf32>
    %520 = arith.addf %492, %519 : vector<8x16xf32>
    %c2_244 = arith.constant 2 : index
    %c27_245 = arith.constant 27 : index
    %521 = memref.load %arg2[%c2_244, %c27_245] : memref<4x36xf32, #tpu.memory_space<smem>>
    %522 = vector.broadcast %521 : f32 to vector<8x16xf32>
    %523 = arith.mulf %512, %522 : vector<8x16xf32>
    %524 = arith.addf %496, %523 : vector<8x16xf32>
    %c3_246 = arith.constant 3 : index
    %c27_247 = arith.constant 27 : index
    %525 = memref.load %arg2[%c3_246, %c27_247] : memref<4x36xf32, #tpu.memory_space<smem>>
    %526 = vector.broadcast %525 : f32 to vector<8x16xf32>
    %527 = arith.mulf %512, %526 : vector<8x16xf32>
    %528 = arith.addf %500, %527 : vector<8x16xf32>
    %529 = vector.extract_strided_slice %507 {offsets = [0, 0], sizes = [8, 16], strides = [1, 1]} : vector<10x16xf32> to vector<8x16xf32>
    %c0_248 = arith.constant 0 : index
    %c28 = arith.constant 28 : index
    %530 = memref.load %arg2[%c0_248, %c28] : memref<4x36xf32, #tpu.memory_space<smem>>
    %531 = vector.broadcast %530 : f32 to vector<8x16xf32>
    %532 = arith.mulf %529, %531 : vector<8x16xf32>
    %533 = arith.addf %516, %532 : vector<8x16xf32>
    %c1_249 = arith.constant 1 : index
    %c28_250 = arith.constant 28 : index
    %534 = memref.load %arg2[%c1_249, %c28_250] : memref<4x36xf32, #tpu.memory_space<smem>>
    %535 = vector.broadcast %534 : f32 to vector<8x16xf32>
    %536 = arith.mulf %529, %535 : vector<8x16xf32>
    %537 = arith.addf %520, %536 : vector<8x16xf32>
    %c2_251 = arith.constant 2 : index
    %c28_252 = arith.constant 28 : index
    %538 = memref.load %arg2[%c2_251, %c28_252] : memref<4x36xf32, #tpu.memory_space<smem>>
    %539 = vector.broadcast %538 : f32 to vector<8x16xf32>
    %540 = arith.mulf %529, %539 : vector<8x16xf32>
    %541 = arith.addf %524, %540 : vector<8x16xf32>
    %c3_253 = arith.constant 3 : index
    %c28_254 = arith.constant 28 : index
    %542 = memref.load %arg2[%c3_253, %c28_254] : memref<4x36xf32, #tpu.memory_space<smem>>
    %543 = vector.broadcast %542 : f32 to vector<8x16xf32>
    %544 = arith.mulf %529, %543 : vector<8x16xf32>
    %545 = arith.addf %528, %544 : vector<8x16xf32>
    %546 = vector.extract_strided_slice %511 {offsets = [0, 0], sizes = [8, 16], strides = [1, 1]} : vector<10x16xf32> to vector<8x16xf32>
    %c0_255 = arith.constant 0 : index
    %c29 = arith.constant 29 : index
    %547 = memref.load %arg2[%c0_255, %c29] : memref<4x36xf32, #tpu.memory_space<smem>>
    %548 = vector.broadcast %547 : f32 to vector<8x16xf32>
    %549 = arith.mulf %546, %548 : vector<8x16xf32>
    %550 = arith.addf %533, %549 : vector<8x16xf32>
    %c1_256 = arith.constant 1 : index
    %c29_257 = arith.constant 29 : index
    %551 = memref.load %arg2[%c1_256, %c29_257] : memref<4x36xf32, #tpu.memory_space<smem>>
    %552 = vector.broadcast %551 : f32 to vector<8x16xf32>
    %553 = arith.mulf %546, %552 : vector<8x16xf32>
    %554 = arith.addf %537, %553 : vector<8x16xf32>
    %c2_258 = arith.constant 2 : index
    %c29_259 = arith.constant 29 : index
    %555 = memref.load %arg2[%c2_258, %c29_259] : memref<4x36xf32, #tpu.memory_space<smem>>
    %556 = vector.broadcast %555 : f32 to vector<8x16xf32>
    %557 = arith.mulf %546, %556 : vector<8x16xf32>
    %558 = arith.addf %541, %557 : vector<8x16xf32>
    %c3_260 = arith.constant 3 : index
    %c29_261 = arith.constant 29 : index
    %559 = memref.load %arg2[%c3_260, %c29_261] : memref<4x36xf32, #tpu.memory_space<smem>>
    %560 = vector.broadcast %559 : f32 to vector<8x16xf32>
    %561 = arith.mulf %546, %560 : vector<8x16xf32>
    %562 = arith.addf %545, %561 : vector<8x16xf32>
    %563 = vector.extract_strided_slice %509 {offsets = [1, 0], sizes = [8, 16], strides = [1, 1]} : vector<10x16xf32> to vector<8x16xf32>
    %c0_262 = arith.constant 0 : index
    %c30 = arith.constant 30 : index
    %564 = memref.load %arg2[%c0_262, %c30] : memref<4x36xf32, #tpu.memory_space<smem>>
    %565 = vector.broadcast %564 : f32 to vector<8x16xf32>
    %566 = arith.mulf %563, %565 : vector<8x16xf32>
    %567 = arith.addf %550, %566 : vector<8x16xf32>
    %c1_263 = arith.constant 1 : index
    %c30_264 = arith.constant 30 : index
    %568 = memref.load %arg2[%c1_263, %c30_264] : memref<4x36xf32, #tpu.memory_space<smem>>
    %569 = vector.broadcast %568 : f32 to vector<8x16xf32>
    %570 = arith.mulf %563, %569 : vector<8x16xf32>
    %571 = arith.addf %554, %570 : vector<8x16xf32>
    %c2_265 = arith.constant 2 : index
    %c30_266 = arith.constant 30 : index
    %572 = memref.load %arg2[%c2_265, %c30_266] : memref<4x36xf32, #tpu.memory_space<smem>>
    %573 = vector.broadcast %572 : f32 to vector<8x16xf32>
    %574 = arith.mulf %563, %573 : vector<8x16xf32>
    %575 = arith.addf %558, %574 : vector<8x16xf32>
    %c3_267 = arith.constant 3 : index
    %c30_268 = arith.constant 30 : index
    %576 = memref.load %arg2[%c3_267, %c30_268] : memref<4x36xf32, #tpu.memory_space<smem>>
    %577 = vector.broadcast %576 : f32 to vector<8x16xf32>
    %578 = arith.mulf %563, %577 : vector<8x16xf32>
    %579 = arith.addf %562, %578 : vector<8x16xf32>
    %580 = vector.extract_strided_slice %507 {offsets = [1, 0], sizes = [8, 16], strides = [1, 1]} : vector<10x16xf32> to vector<8x16xf32>
    %c0_269 = arith.constant 0 : index
    %c31 = arith.constant 31 : index
    %581 = memref.load %arg2[%c0_269, %c31] : memref<4x36xf32, #tpu.memory_space<smem>>
    %582 = vector.broadcast %581 : f32 to vector<8x16xf32>
    %583 = arith.mulf %580, %582 : vector<8x16xf32>
    %584 = arith.addf %567, %583 : vector<8x16xf32>
    %c1_270 = arith.constant 1 : index
    %c31_271 = arith.constant 31 : index
    %585 = memref.load %arg2[%c1_270, %c31_271] : memref<4x36xf32, #tpu.memory_space<smem>>
    %586 = vector.broadcast %585 : f32 to vector<8x16xf32>
    %587 = arith.mulf %580, %586 : vector<8x16xf32>
    %588 = arith.addf %571, %587 : vector<8x16xf32>
    %c2_272 = arith.constant 2 : index
    %c31_273 = arith.constant 31 : index
    %589 = memref.load %arg2[%c2_272, %c31_273] : memref<4x36xf32, #tpu.memory_space<smem>>
    %590 = vector.broadcast %589 : f32 to vector<8x16xf32>
    %591 = arith.mulf %580, %590 : vector<8x16xf32>
    %592 = arith.addf %575, %591 : vector<8x16xf32>
    %c3_274 = arith.constant 3 : index
    %c31_275 = arith.constant 31 : index
    %593 = memref.load %arg2[%c3_274, %c31_275] : memref<4x36xf32, #tpu.memory_space<smem>>
    %594 = vector.broadcast %593 : f32 to vector<8x16xf32>
    %595 = arith.mulf %580, %594 : vector<8x16xf32>
    %596 = arith.addf %579, %595 : vector<8x16xf32>
    %597 = vector.extract_strided_slice %511 {offsets = [1, 0], sizes = [8, 16], strides = [1, 1]} : vector<10x16xf32> to vector<8x16xf32>
    %c0_276 = arith.constant 0 : index
    %c32 = arith.constant 32 : index
    %598 = memref.load %arg2[%c0_276, %c32] : memref<4x36xf32, #tpu.memory_space<smem>>
    %599 = vector.broadcast %598 : f32 to vector<8x16xf32>
    %600 = arith.mulf %597, %599 : vector<8x16xf32>
    %601 = arith.addf %584, %600 : vector<8x16xf32>
    %c1_277 = arith.constant 1 : index
    %c32_278 = arith.constant 32 : index
    %602 = memref.load %arg2[%c1_277, %c32_278] : memref<4x36xf32, #tpu.memory_space<smem>>
    %603 = vector.broadcast %602 : f32 to vector<8x16xf32>
    %604 = arith.mulf %597, %603 : vector<8x16xf32>
    %605 = arith.addf %588, %604 : vector<8x16xf32>
    %c2_279 = arith.constant 2 : index
    %c32_280 = arith.constant 32 : index
    %606 = memref.load %arg2[%c2_279, %c32_280] : memref<4x36xf32, #tpu.memory_space<smem>>
    %607 = vector.broadcast %606 : f32 to vector<8x16xf32>
    %608 = arith.mulf %597, %607 : vector<8x16xf32>
    %609 = arith.addf %592, %608 : vector<8x16xf32>
    %c3_281 = arith.constant 3 : index
    %c32_282 = arith.constant 32 : index
    %610 = memref.load %arg2[%c3_281, %c32_282] : memref<4x36xf32, #tpu.memory_space<smem>>
    %611 = vector.broadcast %610 : f32 to vector<8x16xf32>
    %612 = arith.mulf %597, %611 : vector<8x16xf32>
    %613 = arith.addf %596, %612 : vector<8x16xf32>
    %614 = vector.extract_strided_slice %509 {offsets = [2, 0], sizes = [8, 16], strides = [1, 1]} : vector<10x16xf32> to vector<8x16xf32>
    %c0_283 = arith.constant 0 : index
    %c33 = arith.constant 33 : index
    %615 = memref.load %arg2[%c0_283, %c33] : memref<4x36xf32, #tpu.memory_space<smem>>
    %616 = vector.broadcast %615 : f32 to vector<8x16xf32>
    %617 = arith.mulf %614, %616 : vector<8x16xf32>
    %618 = arith.addf %601, %617 : vector<8x16xf32>
    %c1_284 = arith.constant 1 : index
    %c33_285 = arith.constant 33 : index
    %619 = memref.load %arg2[%c1_284, %c33_285] : memref<4x36xf32, #tpu.memory_space<smem>>
    %620 = vector.broadcast %619 : f32 to vector<8x16xf32>
    %621 = arith.mulf %614, %620 : vector<8x16xf32>
    %622 = arith.addf %605, %621 : vector<8x16xf32>
    %c2_286 = arith.constant 2 : index
    %c33_287 = arith.constant 33 : index
    %623 = memref.load %arg2[%c2_286, %c33_287] : memref<4x36xf32, #tpu.memory_space<smem>>
    %624 = vector.broadcast %623 : f32 to vector<8x16xf32>
    %625 = arith.mulf %614, %624 : vector<8x16xf32>
    %626 = arith.addf %609, %625 : vector<8x16xf32>
    %c3_288 = arith.constant 3 : index
    %c33_289 = arith.constant 33 : index
    %627 = memref.load %arg2[%c3_288, %c33_289] : memref<4x36xf32, #tpu.memory_space<smem>>
    %628 = vector.broadcast %627 : f32 to vector<8x16xf32>
    %629 = arith.mulf %614, %628 : vector<8x16xf32>
    %630 = arith.addf %613, %629 : vector<8x16xf32>
    %631 = vector.extract_strided_slice %507 {offsets = [2, 0], sizes = [8, 16], strides = [1, 1]} : vector<10x16xf32> to vector<8x16xf32>
    %c0_290 = arith.constant 0 : index
    %c34 = arith.constant 34 : index
    %632 = memref.load %arg2[%c0_290, %c34] : memref<4x36xf32, #tpu.memory_space<smem>>
    %633 = vector.broadcast %632 : f32 to vector<8x16xf32>
    %634 = arith.mulf %631, %633 : vector<8x16xf32>
    %635 = arith.addf %618, %634 : vector<8x16xf32>
    %c1_291 = arith.constant 1 : index
    %c34_292 = arith.constant 34 : index
    %636 = memref.load %arg2[%c1_291, %c34_292] : memref<4x36xf32, #tpu.memory_space<smem>>
    %637 = vector.broadcast %636 : f32 to vector<8x16xf32>
    %638 = arith.mulf %631, %637 : vector<8x16xf32>
    %639 = arith.addf %622, %638 : vector<8x16xf32>
    %c2_293 = arith.constant 2 : index
    %c34_294 = arith.constant 34 : index
    %640 = memref.load %arg2[%c2_293, %c34_294] : memref<4x36xf32, #tpu.memory_space<smem>>
    %641 = vector.broadcast %640 : f32 to vector<8x16xf32>
    %642 = arith.mulf %631, %641 : vector<8x16xf32>
    %643 = arith.addf %626, %642 : vector<8x16xf32>
    %c3_295 = arith.constant 3 : index
    %c34_296 = arith.constant 34 : index
    %644 = memref.load %arg2[%c3_295, %c34_296] : memref<4x36xf32, #tpu.memory_space<smem>>
    %645 = vector.broadcast %644 : f32 to vector<8x16xf32>
    %646 = arith.mulf %631, %645 : vector<8x16xf32>
    %647 = arith.addf %630, %646 : vector<8x16xf32>
    %648 = vector.extract_strided_slice %511 {offsets = [2, 0], sizes = [8, 16], strides = [1, 1]} : vector<10x16xf32> to vector<8x16xf32>
    %c0_297 = arith.constant 0 : index
    %c35 = arith.constant 35 : index
    %649 = memref.load %arg2[%c0_297, %c35] : memref<4x36xf32, #tpu.memory_space<smem>>
    %650 = vector.broadcast %649 : f32 to vector<8x16xf32>
    %651 = arith.mulf %648, %650 : vector<8x16xf32>
    %652 = arith.addf %635, %651 : vector<8x16xf32>
    %c1_298 = arith.constant 1 : index
    %c35_299 = arith.constant 35 : index
    %653 = memref.load %arg2[%c1_298, %c35_299] : memref<4x36xf32, #tpu.memory_space<smem>>
    %654 = vector.broadcast %653 : f32 to vector<8x16xf32>
    %655 = arith.mulf %648, %654 : vector<8x16xf32>
    %656 = arith.addf %639, %655 : vector<8x16xf32>
    %c2_300 = arith.constant 2 : index
    %c35_301 = arith.constant 35 : index
    %657 = memref.load %arg2[%c2_300, %c35_301] : memref<4x36xf32, #tpu.memory_space<smem>>
    %658 = vector.broadcast %657 : f32 to vector<8x16xf32>
    %659 = arith.mulf %648, %658 : vector<8x16xf32>
    %660 = arith.addf %643, %659 : vector<8x16xf32>
    %c3_302 = arith.constant 3 : index
    %c35_303 = arith.constant 35 : index
    %661 = memref.load %arg2[%c3_302, %c35_303] : memref<4x36xf32, #tpu.memory_space<smem>>
    %662 = vector.broadcast %661 : f32 to vector<8x16xf32>
    %663 = arith.mulf %648, %662 : vector<8x16xf32>
    %664 = arith.addf %647, %663 : vector<8x16xf32>
    %c0_304 = arith.constant 0 : index
    %c0_305 = arith.constant 0 : index
    %c0_306 = arith.constant 0 : index
    %c0_307 = arith.constant 0 : index
    %665 = vector.load %arg7[%c0_304, %c0_305, %c0_306, %c0_307] : memref<1x4x8x16xf32, #tpu.memory_space<vmem>>, vector<1x1x8x16xf32>
    %666 = vector.shape_cast %665 : vector<1x1x8x16xf32> to vector<8x16xf32>
    %667 = vector.shape_cast %652 : vector<8x16xf32> to vector<1x1x8x16xf32>
    tpu.vector_store %arg7[%c0_304, %c0_305, %c0_306, %c0_307], %667 {strides = array<i32>} : memref<1x4x8x16xf32, #tpu.memory_space<vmem>>, vector<1x1x8x16xf32>,
    %c0_308 = arith.constant 0 : index
    %c1_309 = arith.constant 1 : index
    %c0_310 = arith.constant 0 : index
    %c0_311 = arith.constant 0 : index
    %668 = vector.load %arg7[%c0_308, %c1_309, %c0_310, %c0_311] : memref<1x4x8x16xf32, #tpu.memory_space<vmem>>, vector<1x1x8x16xf32>
    %669 = vector.shape_cast %668 : vector<1x1x8x16xf32> to vector<8x16xf32>
    %670 = vector.shape_cast %656 : vector<8x16xf32> to vector<1x1x8x16xf32>
    tpu.vector_store %arg7[%c0_308, %c1_309, %c0_310, %c0_311], %670 {strides = array<i32>} : memref<1x4x8x16xf32, #tpu.memory_space<vmem>>, vector<1x1x8x16xf32>,
    %c0_312 = arith.constant 0 : index
    %c2_313 = arith.constant 2 : index
    %c0_314 = arith.constant 0 : index
    %c0_315 = arith.constant 0 : index
    %671 = vector.load %arg7[%c0_312, %c2_313, %c0_314, %c0_315] : memref<1x4x8x16xf32, #tpu.memory_space<vmem>>, vector<1x1x8x16xf32>
    %672 = vector.shape_cast %671 : vector<1x1x8x16xf32> to vector<8x16xf32>
    %673 = vector.shape_cast %660 : vector<8x16xf32> to vector<1x1x8x16xf32>
    tpu.vector_store %arg7[%c0_312, %c2_313, %c0_314, %c0_315], %673 {strides = array<i32>} : memref<1x4x8x16xf32, #tpu.memory_space<vmem>>, vector<1x1x8x16xf32>,
    %c0_316 = arith.constant 0 : index
    %c3_317 = arith.constant 3 : index
    %c0_318 = arith.constant 0 : index
    %c0_319 = arith.constant 0 : index
    %674 = vector.load %arg7[%c0_316, %c3_317, %c0_318, %c0_319] : memref<1x4x8x16xf32, #tpu.memory_space<vmem>>, vector<1x1x8x16xf32>
    %675 = vector.shape_cast %674 : vector<1x1x8x16xf32> to vector<8x16xf32>
    %676 = vector.shape_cast %664 : vector<8x16xf32> to vector<1x1x8x16xf32>
    tpu.vector_store %arg7[%c0_316, %c3_317, %c0_318, %c0_319], %676 {strides = array<i32>} : memref<1x4x8x16xf32, #tpu.memory_space<vmem>>, vector<1x1x8x16xf32>,
    return
  }
  func.func @transform_0(%arg0: i32, %arg1: i32) -> (i32, i32) {
    %c0_i32 = arith.constant 0 : i32
    %c0_i32_0 = arith.constant 0 : i32
    %c0_i32_1 = arith.constant 0 : i32
    return %c0_i32, %c0_i32_0 : i32, i32
  }
  func.func @transform_1(%arg0: i32, %arg1: i32) -> i32 {
    %c0_i32 = arith.constant 0 : i32
    %c0_i32_0 = arith.constant 0 : i32
    return %c0_i32 : i32
  }
  func.func @transform_2(%arg0: i32, %arg1: i32) -> (i32, i32, i32, i32) {
    %c0_i32 = arith.constant 0 : i32
    %c0_i32_0 = arith.constant 0 : i32
    %c0_i32_1 = arith.constant 0 : i32
    return %arg0, %c0_i32, %arg1, %c0_i32_0 : i32, i32, i32, i32
  }
  func.func @transform_3(%arg0: i32, %arg1: i32) -> (i32, i32, i32, i32) {
    %c0_i32 = arith.constant 0 : i32
    %c0_i32_0 = arith.constant 0 : i32
    %c0_i32_1 = arith.constant 0 : i32
    return %arg0, %arg1, %c0_i32, %c0_i32_0 : i32, i32, i32, i32
  }
  func.func @transform_4(%arg0: i32, %arg1: i32) -> (i32, i32, i32, i32) {
    %c0_i32 = arith.constant 0 : i32
    %c0_i32_0 = arith.constant 0 : i32
    %c0_i32_1 = arith.constant 0 : i32
    return %arg0, %arg1, %c0_i32, %c0_i32_0 : i32, i32, i32, i32
  }
  func.func @transform_5(%arg0: i32, %arg1: i32) -> (i32, i32, i32, i32) {
    %c0_i32 = arith.constant 0 : i32
    %c0_i32_0 = arith.constant 0 : i32
    %c0_i32_1 = arith.constant 0 : i32
    return %arg0, %c0_i32, %arg1, %c0_i32_0 : i32, i32, i32, i32
  }
}

</mosaic_0001>

<llo_original>
// kernel: repsrb_forward.1
$region0: #{repsrb_forward.1}
  #allocation0 [shape = 'u32[]', space=smem, size = 0x4, offset = 0x4, fixed_abs, tag = 'smem constant byte address 0x4 - core index']
  #allocation1 [shape = 'u32[144,128]{1,0:T(1,128)}', space=vmem, size = 0x12000, scoped, tag = 'internal scratch']
  %s0 = inlined_call_operand.vmem [shape: f32[4,36], index: 0, kind: input, shape index: {}]
  %s1 = inlined_call_operand.vmem [shape: f32[4], index: 1, kind: input, shape index: {}]
  %s2 = inlined_call_operand.vmem [shape: f32[2,4,16,16], index: 2, kind: input, shape index: {}]
  %s3 = inlined_call_operand.vmem [shape: f32[2,2,4,16], index: 3, kind: input, shape index: {}]
  %s4 = inlined_call_operand.vmem [shape: f32[2,2,4,16], index: 4, kind: input, shape index: {}]
  %s5 = inlined_call_operand.hbm [shape: f32[2,4,16,16], index: 5, kind: output, shape index: {}]
  %s6 = sld [smem:[#allocation0]]
  $region99: #{repsrb_forward.1} parent=0
    _
  %s8 = ssub.s32 1, %s6
  %s9 = scalar_select 0, %s8, %s6
  $region1: #{repsrb_forward.1} parent=0
    #allocation2 [shape = 'u8[2048]{0}', space=smem, size = 0x800, scoped, tag = 'input window, operand 0, single buffered']
    #allocation3 [shape = 's32[2]{0}', space=sflag, size = 0x8, scoped, tag = 'scoped memory for repsrb_forward.1']
    #allocation4 [shape = 's32[2]{0}', space=sflag, size = 0x8, scoped, tag = 'scoped memory for repsrb_forward.1']
    #allocation5 [shape = 'u8[512]{0}', space=smem, size = 0x200, scoped, tag = 'input window, operand 1, single buffered']
    #allocation6 [shape = 's32[1]{0}', space=sflag, size = 0x4, scoped, tag = 'scoped memory for repsrb_forward.1']
    #allocation7 [shape = 'u8[32768]{0}', space=vmem, size = 0x8000, scoped, tag = 'input window, operand 2']
    #allocation8 [shape = 'u8[32768]{0}', space=vmem, size = 0x8000, scoped, tag = 'output window, operand 0']
    %10 = vsyncpa [#allocation4], 0
    %11 = vsyncpa [#allocation6], 0
    %12 = vsyncpa [#allocation3], 0
    %s13 = scalar_lea.sflag [#allocation3], 1
    %14 = vsyncpa %s13, 0
    loop: start=0, step=1, limit=6
    $region2: #{repsrb_forward.1} parent=1 // loop_pre_header
      _
    $region3: #{repsrb_forward.1} parent=1 // loop_header
      %s16 = sphi 0, %s20
      %p17 = scmp.ge.s32.totalorder %s16, 6
      %s23 = sphi 0, %s35
      %s24 = sphi 0, %s31
      %s25 = sphi 0, %s23
      %s26 = sphi 0, %s24
      %s27 = sphi 0, %s25
      %s28 = sphi 0, %s26
      %s36 = sphi 0, %s36
      %s38 = sphi 0, %s36
      %s39 = sphi 0, %s38
      %s53 = sphi 0, %s39
      %s57 = sphi 0, %s57
      %s59 = sphi 0, %s57
      %s60 = sphi 0, %s59
      %s74 = sphi 0, %s60
      %s82 = sphi 0, %s84
      %s85 = sphi 0, %s82
      %s86 = sphi 0, %s85
      %s102 = sphi 0, %s86
      %s110 = sphi 0, %s112
      %s113 = sphi 0, %s110
      %s114 = sphi 0, %s113
      %s130 = sphi 0, %s114
      %s138 = sphi 0, %s140
      %s141 = sphi 0, %s138
      %s142 = sphi 0, %s141
      %s158 = sphi 0, %s142
      %s166 = sphi 0, %s168
      %s169 = sphi 0, %s166
      %s170 = sphi 0, %s169
      %s186 = sphi 0, %s170
    $region4: #{repsrb_forward.1} parent=1 // loop_header_branch
      %19 = sbr.rel (%p17) target = $region8
    $region5: #{repsrb_forward.1} parent=1 // loop_body
      %s21 = ssub.s32 %s16, 1
      %s22 = ssub.s32 %s16, 2
      %s29 = sadd.s32 1, %s24
      %p30 = scmp.ge.s32.totalorder %s29, 2
      %s31 = scalar_select %p30, 0, %s29
      %s32 = sadd.s32 1, %s23
      %s33 = scalar_select %p30, %s32, %s23
      %p34 = scmp.ge.s32.totalorder %s33, 2
      %s35 = scalar_select %p34, 0, %s33
      %s37 = sadd.s32 %s36, 1
      %p40 = scmp.eq.s32.totalorder %s16, 3
      %p41 = scmp.ne.s32.totalorder %s36, %s38
      %p42 = scmp.eq.s32.totalorder %s16, 0
      %p43 = por %p41, %p42
      %p44 = scmp.ne.s32.totalorder %s36, %s38
      %p45 = scmp.eq.s32.totalorder %s21, 3
      %p46 = por %p44, %p45
      %p47 = scmp.ne.s32.totalorder %s38, %s39
      %p48 = scmp.eq.s32.totalorder %s21, 0
      %p49 = por %p47, %p48
      %p50 = scmp.ne.s32.totalorder %s38, %s39
      %p51 = scmp.eq.s32.totalorder %s22, 3
      %p52 = por %p50, %p51
      %p54 = scmp.ne.s32.totalorder %s39, %s53
      %p55 = scmp.eq.s32.totalorder %s22, 0
      %p56 = por %p54, %p55
      %s58 = sadd.s32 %s57, 1
      %p61 = scmp.eq.s32.totalorder %s16, 3
      %p62 = scmp.ne.s32.totalorder %s57, %s59
      %p63 = scmp.eq.s32.totalorder %s16, 0
      %p64 = por %p62, %p63
      %p65 = scmp.ne.s32.totalorder %s57, %s59
      %p66 = scmp.eq.s32.totalorder %s21, 3
      %p67 = por %p65, %p66
      %p68 = scmp.ne.s32.totalorder %s59, %s60
      %p69 = scmp.eq.s32.totalorder %s21, 0
      %p70 = por %p68, %p69
      %p71 = scmp.ne.s32.totalorder %s59, %s60
      %p72 = scmp.eq.s32.totalorder %s22, 3
      %p73 = por %p71, %p72
      %p75 = scmp.ne.s32.totalorder %s60, %s74
      %p76 = scmp.eq.s32.totalorder %s22, 0
      %p77 = por %p75, %p76
      %s78 = ssub.s32 %s23, %s35
      %s79 = ssub.s32 %s24, %s31
      %s80 = sor.u32 %s78, %s79
      %p81 = scmp.eq.s32.totalorder %s80, 0
      %s83 = sadd.s32 %s82, 1
      %s84 = scalar_select %p81, %s82, %s83
      %p87 = pneg %p81
      %p88 = scmp.eq.s32.totalorder %s16, 3
      %p89 = por %p87, %p88
      %p90 = scmp.ne.s32.totalorder %s82, %s85
      %p91 = scmp.eq.s32.totalorder %s16, 0
      %p92 = por %p90, %p91
      %p93 = scmp.ne.s32.totalorder %s82, %s85
      %p94 = scmp.eq.s32.totalorder %s21, 3
      %p95 = por %p93, %p94
      %p96 = scmp.ne.s32.totalorder %s85, %s86
      %p97 = scmp.eq.s32.totalorder %s21, 0
      %p98 = por %p96, %p97
      %p99 = scmp.ne.s32.totalorder %s85, %s86
      %p100 = scmp.eq.s32.totalorder %s22, 3
      %p101 = por %p99, %p100
      %p103 = scmp.ne.s32.totalorder %s86, %s102
      %p104 = scmp.eq.s32.totalorder %s22, 0
      %p105 = por %p103, %p104
      %s106 = ssub.s32 %s23, %s35
      %s107 = ssub.s32 %s24, %s31
      %s108 = sor.u32 %s106, %s107
      %p109 = scmp.eq.s32.totalorder %s108, 0
      %s111 = sadd.s32 %s110, 1
      %s112 = scalar_select %p109, %s110, %s111
      %p115 = pneg %p109
      %p116 = scmp.eq.s32.totalorder %s16, 3
      %p117 = por %p115, %p116
      %p118 = scmp.ne.s32.totalorder %s110, %s113
      %p119 = scmp.eq.s32.totalorder %s16, 0
      %p120 = por %p118, %p119
      %p121 = scmp.ne.s32.totalorder %s110, %s113
      %p122 = scmp.eq.s32.totalorder %s21, 3
      %p123 = por %p121, %p122
      %p124 = scmp.ne.s32.totalorder %s113, %s114
      %p125 = scmp.eq.s32.totalorder %s21, 0
      %p126 = por %p124, %p125
      %p127 = scmp.ne.s32.totalorder %s113, %s114
      %p128 = scmp.eq.s32.totalorder %s22, 3
      %p129 = por %p127, %p128
      %p131 = scmp.ne.s32.totalorder %s114, %s130
      %p132 = scmp.eq.s32.totalorder %s22, 0
      %p133 = por %p131, %p132
      %s134 = ssub.s32 %s23, %s35
      %s135 = ssub.s32 %s24, %s31
      %s136 = sor.u32 %s134, %s135
      %p137 = scmp.eq.s32.totalorder %s136, 0
      %s139 = sadd.s32 %s138, 1
      %s140 = scalar_select %p137, %s138, %s139
      %p143 = pneg %p137
      %p144 = scmp.eq.s32.totalorder %s16, 3
      %p145 = por %p143, %p144
      %p146 = scmp.ne.s32.totalorder %s138, %s141
      %p147 = scmp.eq.s32.totalorder %s16, 0
      %p148 = por %p146, %p147
      %p149 = scmp.ne.s32.totalorder %s138, %s141
      %p150 = scmp.eq.s32.totalorder %s21, 3
      %p151 = por %p149, %p150
      %p152 = scmp.ne.s32.totalorder %s141, %s142
      %p153 = scmp.eq.s32.totalorder %s21, 0
      %p154 = por %p152, %p153
      %p155 = scmp.ne.s32.totalorder %s141, %s142
      %p156 = scmp.eq.s32.totalorder %s22, 3
      %p157 = por %p155, %p156
      %p159 = scmp.ne.s32.totalorder %s142, %s158
      %p160 = scmp.eq.s32.totalorder %s22, 0
      %p161 = por %p159, %p160
      %s162 = ssub.s32 %s23, %s35
      %s163 = ssub.s32 %s24, %s31
      %s164 = sor.u32 %s162, %s163
      %p165 = scmp.eq.s32.totalorder %s164, 0
      %s167 = sadd.s32 %s166, 1
      %s168 = scalar_select %p165, %s166, %s167
      %p171 = pneg %p165
      %p172 = scmp.eq.s32.totalorder %s16, 3
      %p173 = por %p171, %p172
      %p174 = scmp.ne.s32.totalorder %s166, %s169
      %p175 = scmp.eq.s32.totalorder %s16, 0
      %p176 = por %p174, %p175
      %p177 = scmp.ne.s32.totalorder %s166, %s169
      %p178 = scmp.eq.s32.totalorder %s21, 3
      %p179 = por %p177, %p178
      %p180 = scmp.ne.s32.totalorder %s169, %s170
      %p181 = scmp.eq.s32.totalorder %s21, 0
      %p182 = por %p180, %p181
      %p183 = scmp.ne.s32.totalorder %s169, %s170
      %p184 = scmp.eq.s32.totalorder %s22, 3
      %p185 = por %p183, %p184
      %p187 = scmp.ne.s32.totalorder %s170, %s186
      %p188 = scmp.eq.s32.totalorder %s22, 0
      %p189 = por %p187, %p188
      %p190 = scmp.le.s32.totalorder 1, %s16
      %p191 = scmp.lt.s32.totalorder %s16, 5
      %p192 = pnand %p190, %p191
      %p193 = pneg %p192
      // Predicated region
      $region9: #{repsrb_forward.1} parent=5 // pred_check
        _
      $region10: #{repsrb_forward.1} parent=5 // pred_check_branch
        %195 = sbr.rel (%p192) target = $region12
      $region11: #{repsrb_forward.1} parent=5 // pred_region
        %s196 = ssub.s32 %s16, 1
        // Predicated region
        $region13: #{repsrb_forward.1} parent=11 // pred_check
          %p197 = pneg %p49
        $region14: #{repsrb_forward.1} parent=11 // pred_check_branch
          %199 = sbr.rel (%p197) target = $region16
        $region15: #{repsrb_forward.1} parent=11 // pred_region
          %s201 = ssub.s32 64, 64
          %202 = vsyncadd [#allocation4], %s201
          %s204 = sshll.u32 %s0, 4
          %s205 = int_to_ptr.vmem [resolvable:$true] %s204
          %207 = dma.vmem_to_smem %s205, 64, [#allocation2], [#allocation4]
        $region16: #{repsrb_forward.1} parent=11 // pred_fallthru
          _
        // Predicated region
        $region17: #{repsrb_forward.1} parent=11 // pred_check
          %p208 = pneg %p70
        $region18: #{repsrb_forward.1} parent=11 // pred_check_branch
          %210 = sbr.rel (%p208) target = $region20
        $region19: #{repsrb_forward.1} parent=11 // pred_region
          %s212 = ssub.s32 16, 16
          %213 = vsyncadd [#allocation6], %s212
          %s215 = sshll.u32 %s1, 4
          %s216 = int_to_ptr.vmem [resolvable:$true] %s215
          %218 = dma.vmem_to_smem %s216, 16, [#allocation5], [#allocation6]
        $region20: #{repsrb_forward.1} parent=11 // pred_fallthru
          _
      $region12: #{repsrb_forward.1} parent=5 // pred_fallthru
        _
      %p219 = scmp.lt.s32.totalorder %s16, 4
      // Predicated region
      $region21: #{repsrb_forward.1} parent=5 // pred_check
        %p220 = pneg %p219
      $region22: #{repsrb_forward.1} parent=5 // pred_check_branch
        %222 = sbr.rel (%p220) target = $region24
      $region23: #{repsrb_forward.1} parent=5 // pred_region
        // Predicated region
        $region25: #{repsrb_forward.1} parent=23 // pred_check
          %p223 = pneg %p92
        $region26: #{repsrb_forward.1} parent=23 // pred_check_branch
          %225 = sbr.rel (%p223) target = $region28
        $region27: #{repsrb_forward.1} parent=23 // pred_region
          %s226 = sand.u32 %s82, 1
          %s227 = sand.u32 %s82, 1
          %s228 = smul.addr %s227, 32
          %s229 = scalar_lea.vmem [#allocation7], %s228
          %s230 = smul.addr %s23, 8
          %s231 = sadd.s32 %s24, %s230
          %s232 = smul.addr %s231, 8
          %s233 = scalar_lea.vmem %s2, %s232
          // Predicated region
          $region29: #{repsrb_forward.1} parent=27 // pred_check
            _
          $region30: #{repsrb_forward.1} parent=27 // pred_check_branch
            %235 = sbr.rel (0) target = $region32
          $region31: #{repsrb_forward.1} parent=27 // pred_region
            // Predicated region
            $region33: #{repsrb_forward.1} parent=31 // pred_check
              _
            $region34: #{repsrb_forward.1} parent=31 // pred_check_branch
              %237 = sbr.rel (0) target = $region36
            $region35: #{repsrb_forward.1} parent=31 // pred_region
              // Predicated region
              $region48: #{repsrb_forward.1} parent=35 // pred_check
                _
              $region49: #{repsrb_forward.1} parent=35 // pred_check_branch
                %258 = sbr.rel (0) target = $region51
              $region50: #{repsrb_forward.1} parent=35 // pred_region
                loop: start=0, step=1, limit=1
                $region52: #{repsrb_forward.1} parent=50 // loop_pre_header
                  _
                $region53: #{repsrb_forward.1} parent=50 // loop_header
                  %s260 = sphi 0, %s264
                  %p261 = scmp.ge.s32.totalorder %s260, 1
                  %s265 = sphi %s233, %s233
                  %s266 = sphi %s229, %s229
                $region54: #{repsrb_forward.1} parent=50 // loop_header_branch
                  %263 = sbr.rel (%p261) target = $region58
                $region55: #{repsrb_forward.1} parent=50 // loop_body
                  %v267 = vld [vmem:[%s265] sm:$0xff]
                  %268 = vst [vmem:[%s266] sm:$0xff] %v267
                  %v269 = vld [vmem:[%s265 + $0x10] sm:$0xff]
                  %270 = vst [vmem:[%s266 + $0x8] sm:$0xff] %v269
                  %v271 = vld [vmem:[%s265 + $0x20] sm:$0xff]
                  %272 = vst [vmem:[%s266 + $0x10] sm:$0xff] %v271
                  %v273 = vld [vmem:[%s265 + $0x30] sm:$0xff]
                  %274 = vst [vmem:[%s266 + $0x18] sm:$0xff] %v273
                $region56: #{repsrb_forward.1} parent=50 // loop_footer
                  %s264 = sadd.s32 1, %s260
                $region57: #{repsrb_forward.1} parent=50 // loop_footer_branch
                  %259 = sbr.rel target = $region53
                $region58: #{repsrb_forward.1} parent=50 // loop_exit
                  _
              $region51: #{repsrb_forward.1} parent=35 // pred_fallthru
                _
              // Predicated region
              $region59: #{repsrb_forward.1} parent=35 // pred_check
                _
              $region60: #{repsrb_forward.1} parent=35 // pred_check_branch
                %276 = sbr.rel target = $region62
              $region61: #{repsrb_forward.1} parent=35 // pred_region
                _
              $region62: #{repsrb_forward.1} parent=35 // pred_fallthru
                _
            $region36: #{repsrb_forward.1} parent=31 // pred_fallthru
              _
            // Predicated region
            $region37: #{repsrb_forward.1} parent=31 // pred_check
              _
            $region38: #{repsrb_forward.1} parent=31 // pred_check_branch
              %239 = sbr.rel target = $region40
            $region39: #{repsrb_forward.1} parent=31 // pred_region
              loop: start=0, step=1, limit=1
              $region41: #{repsrb_forward.1} parent=39 // loop_pre_header
                _
              $region42: #{repsrb_forward.1} parent=39 // loop_header
                %s242 = sphi 0, %s246
                %p243 = scmp.ge.s32.totalorder %s242, 1
                %s247 = sphi %s233, %s233
                %s248 = sphi %s229, %s229
              $region43: #{repsrb_forward.1} parent=39 // loop_header_branch
                %245 = sbr.rel (%p243) target = $region47
              $region44: #{repsrb_forward.1} parent=39 // loop_body
                %v249 = vld [vmem:[%s247] sm:$0xff]
                %250 = vst [vmem:[%s248] sm:$0xff] %v249
                %v251 = vld [vmem:[%s247 + $0x10] sm:$0xff]
                %252 = vst [vmem:[%s248 + $0x8] sm:$0xff] %v251
                %v253 = vld [vmem:[%s247 + $0x20] sm:$0xff]
                %254 = vst [vmem:[%s248 + $0x10] sm:$0xff] %v253
                %v255 = vld [vmem:[%s247 + $0x30] sm:$0xff]
                %256 = vst [vmem:[%s248 + $0x18] sm:$0xff] %v255
              $region45: #{repsrb_forward.1} parent=39 // loop_footer
                %s246 = sadd.s32 1, %s242
              $region46: #{repsrb_forward.1} parent=39 // loop_footer_branch
                %241 = sbr.rel target = $region42
              $region47: #{repsrb_forward.1} parent=39 // loop_exit
                _
            $region40: #{repsrb_forward.1} parent=31 // pred_fallthru
              _
          $region32: #{repsrb_forward.1} parent=27 // pred_fallthru
            _
          %277 = vnop
        $region28: #{repsrb_forward.1} parent=23 // pred_fallthru
          _
        // Predicated region
        $region63: #{repsrb_forward.1} parent=23 // pred_check
          %p278 = pneg %p120
        $region64: #{repsrb_forward.1} parent=23 // pred_check_branch
          %280 = sbr.rel (%p278) target = $region66
        $region65: #{repsrb_forward.1} parent=23 // pred_region
          %p281 = scmp.lt.s32.totalorder %s23, 1
          %s282 = scalar_select %p281, %s23, 1
          %p283 = scmp.lt.s32.totalorder %s24, 1
          %s284 = scalar_select %p283, %s24, 1
          %s285 = smul.addr %s282, 2
          %s286 = sadd.s32 %s284, %s285
          %s287 = smul.addr %s286, 4
          %s288 = scalar_lea.vmem %s3, %s287
        $region66: #{repsrb_forward.1} parent=23 // pred_fallthru
          _
        // Predicated region
        $region67: #{repsrb_forward.1} parent=23 // pred_check
          %p289 = pneg %p148
        $region68: #{repsrb_forward.1} parent=23 // pred_check_branch
          %291 = sbr.rel (%p289) target = $region70
        $region69: #{repsrb_forward.1} parent=23 // pred_region
          %p292 = scmp.lt.s32.totalorder %s23, 1
          %s293 = scalar_select %p292, %s23, 1
          %p294 = scmp.lt.s32.totalorder %s24, 1
          %s295 = scalar_select %p294, %s24, 1
          %s296 = smul.addr %s293, 2
          %s297 = sadd.s32 %s295, %s296
          %s298 = smul.addr %s297, 4
          %s299 = scalar_lea.vmem %s4, %s298
        $region70: #{repsrb_forward.1} parent=23 // pred_fallthru
          _
      $region24: #{repsrb_forward.1} parent=5 // pred_fallthru
        _
      %p300 = scmp.le.s32.totalorder 1, %s16
      %p301 = scmp.lt.s32.totalorder %s16, 5
      %p302 = pnand %p300, %p301
      %p303 = pneg %p302
      // Predicated region
      $region71: #{repsrb_forward.1} parent=5 // pred_check
        _
      $region72: #{repsrb_forward.1} parent=5 // pred_check_branch
        %305 = sbr.rel (%p302) target = $region74
      $region73: #{repsrb_forward.1} parent=5 // pred_region
        %s306 = ssub.s32 %s16, 1
        // Predicated region
        $region75: #{repsrb_forward.1} parent=73 // pred_check
          %p307 = pneg %p49
        $region76: #{repsrb_forward.1} parent=73 // pred_check_branch
          %309 = sbr.rel (%p307) target = $region78
        $region77: #{repsrb_forward.1} parent=73 // pred_region
          %310 = dma.done [#allocation4], 64
        $region78: #{repsrb_forward.1} parent=73 // pred_fallthru
          _
        // Predicated region
        $region79: #{repsrb_forward.1} parent=73 // pred_check
          %p311 = pneg %p70
        $region80: #{repsrb_forward.1} parent=73 // pred_check_branch
          %313 = sbr.rel (%p311) target = $region82
        $region81: #{repsrb_forward.1} parent=73 // pred_region
          %314 = dma.done [#allocation6], 16
        $region82: #{repsrb_forward.1} parent=73 // pred_fallthru
          _
        %s315 = sand.u32 %s85, 1
        %s316 = sand.u32 %s85, 1
        %s317 = smul.addr %s316, 32
        %s318 = scalar_lea.vmem [#allocation7], %s317
        // Predicated region
        $region83: #{repsrb_forward.1} parent=73 // pred_check
          %p319 = pneg %p98
        $region84: #{repsrb_forward.1} parent=73 // pred_check_branch
          %321 = sbr.rel (%p319) target = $region86
        $region85: #{repsrb_forward.1} parent=73 // pred_region
          _
        $region86: #{repsrb_forward.1} parent=73 // pred_fallthru
          _
        %322 = sfence
        %p323 = pneg %p49
        %p324 = pneg %p46
        %p325 = pneg %p70
        %p326 = pneg %p67
        %s327 = sand.u32 %s85, 1
        %s328 = sand.u32 %s85, 1
        %s329 = smul.addr %s328, 32
        %s330 = scalar_lea.vmem [#allocation7], %s329
        %p331 = pneg %p98
        %p332 = pneg %p95
        %p333 = scmp.lt.s32.totalorder %s25, 1
        %s334 = scalar_select %p333, %s25, 1
        %p335 = scmp.lt.s32.totalorder %s26, 1
        %s336 = scalar_select %p335, %s26, 1
        %s337 = smul.addr %s334, 2
        %s338 = sadd.s32 %s336, %s337
        %s339 = smul.addr %s338, 4
        %s340 = scalar_lea.vmem %s3, %s339
        %p341 = pneg %p126
        %p342 = pneg %p123
        %p343 = scmp.lt.s32.totalorder %s25, 1
        %s344 = scalar_select %p343, %s25, 1
        %p345 = scmp.lt.s32.totalorder %s26, 1
        %s346 = scalar_select %p345, %s26, 1
        %s347 = smul.addr %s344, 2
        %s348 = sadd.s32 %s346, %s347
        %s349 = smul.addr %s348, 4
        %s350 = scalar_lea.vmem %s4, %s349
        %p351 = pneg %p154
        %p352 = pneg %p151
        %p353 = pneg %p182
        %p354 = pneg %p179
        %s355 = sand.u32 %s169, 1
        %s356 = scalar_lea.sflag [#allocation3], %s355
        %s357 = sand.u32 %s169, 1
        %s358 = smul.addr %s357, 32
        %s359 = scalar_lea.vmem [#allocation8], %s358
        %p360 = scmp.lt.s32.totalorder %s25, 1
        %s361 = scalar_select %p360, %s25, 1
        %p362 = scmp.lt.s32.totalorder %s26, 1
        %s363 = scalar_select %p362, %s26, 1
        %s364 = smul.addr %s361, 2
        %s365 = sadd.s32 %s363, %s364
        %s366 = smul.addr %s365, 4
        %s367 = scalar_lea.vmem %s3, %s366
        %p368 = scmp.lt.s32.totalorder %s25, 1
        %s369 = scalar_select %p368, %s25, 1
        %p370 = scmp.lt.s32.totalorder %s26, 1
        %s371 = scalar_select %p370, %s26, 1
        %s372 = smul.addr %s369, 2
        %s373 = sadd.s32 %s371, %s372
        %s374 = smul.addr %s373, 4
        %s375 = scalar_lea.vmem %s4, %s374
        %s376 = sld [smem:[#allocation5]]
        %v377 = vstv %s376
        %s378 = sld [smem:[#allocation5 + $0x1]]
        %v379 = vstv %s378
        %s380 = sld [smem:[#allocation5 + $0x2]]
        %v381 = vstv %s380
        %s382 = sld [smem:[#allocation5 + $0x3]]
        %v383 = vstv %s382
        %v384 = vld [vmem:[%s367] sm:$0x1]
        %v385 = vld [vmem:[%s318] sm:$0xff]
        %v386 = vld [vmem:[%s375] sm:$0x1]
        %v388 = vrot.slane %v385, 7
        %v391 = vrot.slane %v386, 7
        %vm393 = vcmask 1040384
        %v394 = vsel %vm393, %v384, %v388
        %v395 = vsel %vm393, %v388, %v391
        %398 = vrot.lane.b32.xlu0 %v394, 1
        %v399 = vpop.permute.xlu0 %398
        %400 = vrot.lane.b32.xlu0 %v395, 1
        %v401 = vpop.permute.xlu0 %400
        %vm404 = vcmask 7168
        %v405 = vsel %vm404, 0.0, %v399
        %v406 = vsel %vm404, 0.0, %v401
        %407 = vrot.lane.b32.xlu0 %v394, 127
        %v408 = vpop.permute.xlu0 %407
        %409 = vrot.lane.b32.xlu0 %v395, 127
        %v410 = vpop.permute.xlu0 %409
        %vm413 = vcmask 121856
        %v414 = vsel %vm413, %v408, 0.0
        %v415 = vsel %vm413, %v410, 0.0
        %s416 = sld [smem:[#allocation2]]
        %v417 = vstv %s416
        %v418 = vmul.f32 %v405, %v417
        %v419 = vadd.f32 %v377, %v418
        %s420 = sld [smem:[#allocation2 + $0x80]]
        %v421 = vstv %s420
        %v422 = vmul.f32 %v405, %v421
        %v423 = vadd.f32 %v379, %v422
        %s424 = sld [smem:[#allocation2 + $0x100]]
        %v425 = vstv %s424
        %v426 = vmul.f32 %v405, %v425
        %v427 = vadd.f32 %v381, %v426
        %s428 = sld [smem:[#allocation2 + $0x180]]
        %v429 = vstv %s428
        %v430 = vmul.f32 %v405, %v429
        %v431 = vadd.f32 %v383, %v430
        %s432 = sld [smem:[#allocation2 + $0x1]]
        %v433 = vstv %s432
        %v434 = vmul.f32 %v394, %v433
        %v435 = vadd.f32 %v419, %v434
        %s436 = sld [smem:[#allocation2 + $0x81]]
        %v437 = vstv %s436
        %v438 = vmul.f32 %v394, %v437
        %v439 = vadd.f32 %v423, %v438
        %s440 = sld [smem:[#allocation2 + $0x101]]
        %v441 = vstv %s440
        %v442 = vmul.f32 %v394, %v441
        %v443 = vadd.f32 %v427, %v442
        %s444 = sld [smem:[#allocation2 + $0x181]]
        %v445 = vstv %s444
        %v446 = vmul.f32 %v394, %v445
        %v447 = vadd.f32 %v431, %v446
        %s448 = sld [smem:[#allocation2 + $0x2]]
        %v449 = vstv %s448
        %v450 = vmul.f32 %v414, %v449
        %v451 = vadd.f32 %v435, %v450
        %s452 = sld [smem:[#allocation2 + $0x82]]
        %v453 = vstv %s452
        %v454 = vmul.f32 %v414, %v453
        %v455 = vadd.f32 %v439, %v454
        %s456 = sld [smem:[#allocation2 + $0x102]]
        %v457 = vstv %s456
        %v458 = vmul.f32 %v414, %v457
        %v459 = vadd.f32 %v443, %v458
        %s460 = sld [smem:[#allocation2 + $0x182]]
        %v461 = vstv %s460
        %v462 = vmul.f32 %v414, %v461
        %v463 = vadd.f32 %v447, %v462
        %s464 = sld [smem:[#allocation2 + $0x3]]
        %v465 = vstv %s464
        %v466 = vmul.f32 %v405, %v465
        %v467 = vmul.f32 %v406, %v465
        %vm470 = vcmask 1046528
        %v471 = vrot.slane %v466, 1
        %v472 = vrot.slane %v467, 1
        %v473 = vsel %vm470, %v471, %v472
        %v475 = vadd.f32 %v451, %v473
        %s476 = sld [smem:[#allocation2 + $0x83]]
        %v477 = vstv %s476
        %v478 = vmul.f32 %v405, %v477
        %v479 = vmul.f32 %v406, %v477
        %v482 = vrot.slane %v478, 1
        %v483 = vrot.slane %v479, 1
        %v484 = vsel %vm470, %v482, %v483
        %v486 = vadd.f32 %v455, %v484
        %s487 = sld [smem:[#allocation2 + $0x103]]
        %v488 = vstv %s487
        %v489 = vmul.f32 %v405, %v488
        %v490 = vmul.f32 %v406, %v488
        %v493 = vrot.slane %v489, 1
        %v494 = vrot.slane %v490, 1
        %v495 = vsel %vm470, %v493, %v494
        %v497 = vadd.f32 %v459, %v495
        %s498 = sld [smem:[#allocation2 + $0x183]]
        %v499 = vstv %s498
        %v500 = vmul.f32 %v405, %v499
        %v501 = vmul.f32 %v406, %v499
        %v504 = vrot.slane %v500, 1
        %v505 = vrot.slane %v501, 1
        %v506 = vsel %vm470, %v504, %v505
        %v508 = vadd.f32 %v463, %v506
        %s509 = sld [smem:[#allocation2 + $0x4]]
        %v510 = vstv %s509
        %v511 = vmul.f32 %v394, %v510
        %v512 = vmul.f32 %v395, %v510
        %v515 = vrot.slane %v511, 1
        %v516 = vrot.slane %v512, 1
        %v517 = vsel %vm470, %v515, %v516
        %v519 = vadd.f32 %v475, %v517
        %s520 = sld [smem:[#allocation2 + $0x84]]
        %v521 = vstv %s520
        %v522 = vmul.f32 %v394, %v521
        %v523 = vmul.f32 %v395, %v521
        %v526 = vrot.slane %v522, 1
        %v527 = vrot.slane %v523, 1
        %v528 = vsel %vm470, %v526, %v527
        %v530 = vadd.f32 %v486, %v528
        %s531 = sld [smem:[#allocation2 + $0x104]]
        %v532 = vstv %s531
        %v533 = vmul.f32 %v394, %v532
        %v534 = vmul.f32 %v395, %v532
        %v537 = vrot.slane %v533, 1
        %v538 = vrot.slane %v534, 1
        %v539 = vsel %vm470, %v537, %v538
        %v541 = vadd.f32 %v497, %v539
        %s542 = sld [smem:[#allocation2 + $0x184]]
        %v543 = vstv %s542
        %v544 = vmul.f32 %v394, %v543
        %v545 = vmul.f32 %v395, %v543
        %v548 = vrot.slane %v544, 1
        %v549 = vrot.slane %v545, 1
        %v550 = vsel %vm470, %v548, %v549
        %v552 = vadd.f32 %v508, %v550
        %s553 = sld [smem:[#allocation2 + $0x5]]
        %v554 = vstv %s553
        %v555 = vmul.f32 %v414, %v554
        %v556 = vmul.f32 %v415, %v554
        %v559 = vrot.slane %v555, 1
        %v560 = vrot.slane %v556, 1
        %v561 = vsel %vm470, %v559, %v560
        %v563 = vadd.f32 %v519, %v561
        %s564 = sld [smem:[#allocation2 + $0x85]]
        %v565 = vstv %s564
        %v566 = vmul.f32 %v414, %v565
        %v567 = vmul.f32 %v415, %v565
        %v570 = vrot.slane %v566, 1
        %v571 = vrot.slane %v567, 1
        %v572 = vsel %vm470, %v570, %v571
        %v574 = vadd.f32 %v530, %v572
        %s575 = sld [smem:[#allocation2 + $0x105]]
        %v576 = vstv %s575
        %v577 = vmul.f32 %v414, %v576
        %v578 = vmul.f32 %v415, %v576
        %v581 = vrot.slane %v577, 1
        %v582 = vrot.slane %v578, 1
        %v583 = vsel %vm470, %v581, %v582
        %v585 = vadd.f32 %v541, %v583
        %s586 = sld [smem:[#allocation2 + $0x185]]
        %v587 = vstv %s586
        %v588 = vmul.f32 %v414, %v587
        %v589 = vmul.f32 %v415, %v587
        %v592 = vrot.slane %v588, 1
        %v593 = vrot.slane %v589, 1
        %v594 = vsel %vm470, %v592, %v593
        %v596 = vadd.f32 %v552, %v594
        %s597 = sld [smem:[#allocation2 + $0x6]]
        %v598 = vstv %s597
        %v599 = vmul.f32 %v405, %v598
        %v600 = vmul.f32 %v406, %v598
        %vm603 = vcmask 1045504
        %v604 = vrot.slane %v599, 2
        %v605 = vrot.slane %v600, 2
        %v606 = vsel %vm603, %v604, %v605
        %v608 = vadd.f32 %v563, %v606
        %s609 = sld [smem:[#allocation2 + $0x86]]
        %v610 = vstv %s609
        %v611 = vmul.f32 %v405, %v610
        %v612 = vmul.f32 %v406, %v610
        %v615 = vrot.slane %v611, 2
        %v616 = vrot.slane %v612, 2
        %v617 = vsel %vm603, %v615, %v616
        %v619 = vadd.f32 %v574, %v617
        %s620 = sld [smem:[#allocation2 + $0x106]]
        %v621 = vstv %s620
        %v622 = vmul.f32 %v405, %v621
        %v623 = vmul.f32 %v406, %v621
        %v626 = vrot.slane %v622, 2
        %v627 = vrot.slane %v623, 2
        %v628 = vsel %vm603, %v626, %v627
        %v630 = vadd.f32 %v585, %v628
        %s631 = sld [smem:[#allocation2 + $0x186]]
        %v632 = vstv %s631
        %v633 = vmul.f32 %v405, %v632
        %v634 = vmul.f32 %v406, %v632
        %v637 = vrot.slane %v633, 2
        %v638 = vrot.slane %v634, 2
        %v639 = vsel %vm603, %v637, %v638
        %v641 = vadd.f32 %v596, %v639
        %s642 = sld [smem:[#allocation2 + $0x7]]
        %v643 = vstv %s642
        %v644 = vmul.f32 %v394, %v643
        %v645 = vmul.f32 %v395, %v643
        %v648 = vrot.slane %v644, 2
        %v649 = vrot.slane %v645, 2
        %v650 = vsel %vm603, %v648, %v649
        %v652 = vadd.f32 %v608, %v650
        %s653 = sld [smem:[#allocation2 + $0x87]]
        %v654 = vstv %s653
        %v655 = vmul.f32 %v394, %v654
        %v656 = vmul.f32 %v395, %v654
        %v659 = vrot.slane %v655, 2
        %v660 = vrot.slane %v656, 2
        %v661 = vsel %vm603, %v659, %v660
        %v663 = vadd.f32 %v619, %v661
        %s664 = sld [smem:[#allocation2 + $0x107]]
        %v665 = vstv %s664
        %v666 = vmul.f32 %v394, %v665
        %v667 = vmul.f32 %v395, %v665
        %v670 = vrot.slane %v666, 2
        %v671 = vrot.slane %v667, 2
        %v672 = vsel %vm603, %v670, %v671
        %v674 = vadd.f32 %v630, %v672
        %s675 = sld [smem:[#allocation2 + $0x187]]
        %v676 = vstv %s675
        %v677 = vmul.f32 %v394, %v676
        %v678 = vmul.f32 %v395, %v676
        %v681 = vrot.slane %v677, 2
        %v682 = vrot.slane %v678, 2
        %v683 = vsel %vm603, %v681, %v682
        %v685 = vadd.f32 %v641, %v683
        %s686 = sld [smem:[#allocation2 + $0x8]]
        %v687 = vstv %s686
        %v688 = vmul.f32 %v414, %v687
        %v689 = vmul.f32 %v415, %v687
        %v692 = vrot.slane %v688, 2
        %v693 = vrot.slane %v689, 2
        %v694 = vsel %vm603, %v692, %v693
        %v696 = vadd.f32 %v652, %v694
        %s697 = sld [smem:[#allocation2 + $0x88]]
        %v698 = vstv %s697
        %v699 = vmul.f32 %v414, %v698
        %v700 = vmul.f32 %v415, %v698
        %v703 = vrot.slane %v699, 2
        %v704 = vrot.slane %v700, 2
        %v705 = vsel %vm603, %v703, %v704
        %v707 = vadd.f32 %v663, %v705
        %s708 = sld [smem:[#allocation2 + $0x108]]
        %v709 = vstv %s708
        %v710 = vmul.f32 %v414, %v709
        %v711 = vmul.f32 %v415, %v709
        %v714 = vrot.slane %v710, 2
        %v715 = vrot.slane %v711, 2
        %v716 = vsel %vm603, %v714, %v715
        %v718 = vadd.f32 %v674, %v716
        %s719 = sld [smem:[#allocation2 + $0x188]]
        %v720 = vstv %s719
        %v721 = vmul.f32 %v414, %v720
        %v722 = vmul.f32 %v415, %v720
        %v725 = vrot.slane %v721, 2
        %v726 = vrot.slane %v722, 2
        %v727 = vsel %vm603, %v725, %v726
        %v729 = vadd.f32 %v685, %v727
        %v730 = vld [vmem:[%s367 + $0x1] sm:$0x1]
        %s731 = scalar_lea.vmem %s318, 8 [#allocation7]
        %v732 = vld [vmem:[%s731] sm:$0xff]
        %v733 = vld [vmem:[%s375 + $0x1] sm:$0x1]
        %v735 = vrot.slane %v732, 7
        %v738 = vrot.slane %v733, 7
        %v740 = vsel %vm393, %v730, %v735
        %v741 = vsel %vm393, %v735, %v738
        %744 = vrot.lane.b32.xlu0 %v740, 1
        %v745 = vpop.permute.xlu0 %744
        %746 = vrot.lane.b32.xlu0 %v741, 1
        %v747 = vpop.permute.xlu0 %746
        %v750 = vsel %vm404, 0.0, %v745
        %v751 = vsel %vm404, 0.0, %v747
        %752 = vrot.lane.b32.xlu0 %v740, 127
        %v753 = vpop.permute.xlu0 %752
        %754 = vrot.lane.b32.xlu0 %v741, 127
        %v755 = vpop.permute.xlu0 %754
        %v758 = vsel %vm413, %v753, 0.0
        %v759 = vsel %vm413, %v755, 0.0
        %s760 = sld [smem:[#allocation2 + $0x9]]
        %v761 = vstv %s760
        %v762 = vmul.f32 %v750, %v761
        %v763 = vadd.f32 %v696, %v762
        %s764 = sld [smem:[#allocation2 + $0x89]]
        %v765 = vstv %s764
        %v766 = vmul.f32 %v750, %v765
        %v767 = vadd.f32 %v707, %v766
        %s768 = sld [smem:[#allocation2 + $0x109]]
        %v769 = vstv %s768
        %v770 = vmul.f32 %v750, %v769
        %v771 = vadd.f32 %v718, %v770
        %s772 = sld [smem:[#allocation2 + $0x189]]
        %v773 = vstv %s772
        %v774 = vmul.f32 %v750, %v773
        %v775 = vadd.f32 %v729, %v774
        %s776 = sld [smem:[#allocation2 + $0xa]]
        %v777 = vstv %s776
        %v778 = vmul.f32 %v740, %v777
        %v779 = vadd.f32 %v763, %v778
        %s780 = sld [smem:[#allocation2 + $0x8a]]
        %v781 = vstv %s780
        %v782 = vmul.f32 %v740, %v781
        %v783 = vadd.f32 %v767, %v782
        %s784 = sld [smem:[#allocation2 + $0x10a]]
        %v785 = vstv %s784
        %v786 = vmul.f32 %v740, %v785
        %v787 = vadd.f32 %v771, %v786
        %s788 = sld [smem:[#allocation2 + $0x18a]]
        %v789 = vstv %s788
        %v790 = vmul.f32 %v740, %v789
        %v791 = vadd.f32 %v775, %v790
        %s792 = sld [smem:[#allocation2 + $0xb]]
        %v793 = vstv %s792
        %v794 = vmul.f32 %v758, %v793
        %v795 = vadd.f32 %v779, %v794
        %s796 = sld [smem:[#allocation2 + $0x8b]]
        %v797 = vstv %s796
        %v798 = vmul.f32 %v758, %v797
        %v799 = vadd.f32 %v783, %v798
        %s800 = sld [smem:[#allocation2 + $0x10b]]
        %v801 = vstv %s800
        %v802 = vmul.f32 %v758, %v801
        %v803 = vadd.f32 %v787, %v802
        %s804 = sld [smem:[#allocation2 + $0x18b]]
        %v805 = vstv %s804
        %v806 = vmul.f32 %v758, %v805
        %v807 = vadd.f32 %v791, %v806
        %s808 = sld [smem:[#allocation2 + $0xc]]
        %v809 = vstv %s808
        %v810 = vmul.f32 %v750, %v809
        %v811 = vmul.f32 %v751, %v809
        %v814 = vrot.slane %v810, 1
        %v815 = vrot.slane %v811, 1
        %v816 = vsel %vm470, %v814, %v815
        %v818 = vadd.f32 %v795, %v816
        %s819 = sld [smem:[#allocation2 + $0x8c]]
        %v820 = vstv %s819
        %v821 = vmul.f32 %v750, %v820
        %v822 = vmul.f32 %v751, %v820
        %v825 = vrot.slane %v821, 1
        %v826 = vrot.slane %v822, 1
        %v827 = vsel %vm470, %v825, %v826
        %v829 = vadd.f32 %v799, %v827
        %s830 = sld [smem:[#allocation2 + $0x10c]]
        %v831 = vstv %s830
        %v832 = vmul.f32 %v750, %v831
        %v833 = vmul.f32 %v751, %v831
        %v836 = vrot.slane %v832, 1
        %v837 = vrot.slane %v833, 1
        %v838 = vsel %vm470, %v836, %v837
        %v840 = vadd.f32 %v803, %v838
        %s841 = sld [smem:[#allocation2 + $0x18c]]
        %v842 = vstv %s841
        %v843 = vmul.f32 %v750, %v842
        %v844 = vmul.f32 %v751, %v842
        %v847 = vrot.slane %v843, 1
        %v848 = vrot.slane %v844, 1
        %v849 = vsel %vm470, %v847, %v848
        %v851 = vadd.f32 %v807, %v849
        %s852 = sld [smem:[#allocation2 + $0xd]]
        %v853 = vstv %s852
        %v854 = vmul.f32 %v740, %v853
        %v855 = vmul.f32 %v741, %v853
        %v858 = vrot.slane %v854, 1
        %v859 = vrot.slane %v855, 1
        %v860 = vsel %vm470, %v858, %v859
        %v862 = vadd.f32 %v818, %v860
        %s863 = sld [smem:[#allocation2 + $0x8d]]
        %v864 = vstv %s863
        %v865 = vmul.f32 %v740, %v864
        %v866 = vmul.f32 %v741, %v864
        %v869 = vrot.slane %v865, 1
        %v870 = vrot.slane %v866, 1
        %v871 = vsel %vm470, %v869, %v870
        %v873 = vadd.f32 %v829, %v871
        %s874 = sld [smem:[#allocation2 + $0x10d]]
        %v875 = vstv %s874
        %v876 = vmul.f32 %v740, %v875
        %v877 = vmul.f32 %v741, %v875
        %v880 = vrot.slane %v876, 1
        %v881 = vrot.slane %v877, 1
        %v882 = vsel %vm470, %v880, %v881
        %v884 = vadd.f32 %v840, %v882
        %s885 = sld [smem:[#allocation2 + $0x18d]]
        %v886 = vstv %s885
        %v887 = vmul.f32 %v740, %v886
        %v888 = vmul.f32 %v741, %v886
        %v891 = vrot.slane %v887, 1
        %v892 = vrot.slane %v888, 1
        %v893 = vsel %vm470, %v891, %v892
        %v895 = vadd.f32 %v851, %v893
        %s896 = sld [smem:[#allocation2 + $0xe]]
        %v897 = vstv %s896
        %v898 = vmul.f32 %v758, %v897
        %v899 = vmul.f32 %v759, %v897
        %v902 = vrot.slane %v898, 1
        %v903 = vrot.slane %v899, 1
        %v904 = vsel %vm470, %v902, %v903
        %v906 = vadd.f32 %v862, %v904
        %s907 = sld [smem:[#allocation2 + $0x8e]]
        %v908 = vstv %s907
        %v909 = vmul.f32 %v758, %v908
        %v910 = vmul.f32 %v759, %v908
        %v913 = vrot.slane %v909, 1
        %v914 = vrot.slane %v910, 1
        %v915 = vsel %vm470, %v913, %v914
        %v917 = vadd.f32 %v873, %v915
        %s918 = sld [smem:[#allocation2 + $0x10e]]
        %v919 = vstv %s918
        %v920 = vmul.f32 %v758, %v919
        %v921 = vmul.f32 %v759, %v919
        %v924 = vrot.slane %v920, 1
        %v925 = vrot.slane %v921, 1
        %v926 = vsel %vm470, %v924, %v925
        %v928 = vadd.f32 %v884, %v926
        %s929 = sld [smem:[#allocation2 + $0x18e]]
        %v930 = vstv %s929
        %v931 = vmul.f32 %v758, %v930
        %v932 = vmul.f32 %v759, %v930
        %v935 = vrot.slane %v931, 1
        %v936 = vrot.slane %v932, 1
        %v937 = vsel %vm470, %v935, %v936
        %v939 = vadd.f32 %v895, %v937
        %s940 = sld [smem:[#allocation2 + $0xf]]
        %v941 = vstv %s940
        %v942 = vmul.f32 %v750, %v941
        %v943 = vmul.f32 %v751, %v941
        %v946 = vrot.slane %v942, 2
        %v947 = vrot.slane %v943, 2
        %v948 = vsel %vm603, %v946, %v947
        %v950 = vadd.f32 %v906, %v948
        %s951 = sld [smem:[#allocation2 + $0x8f]]
        %v952 = vstv %s951
        %v953 = vmul.f32 %v750, %v952
        %v954 = vmul.f32 %v751, %v952
        %v957 = vrot.slane %v953, 2
        %v958 = vrot.slane %v954, 2
        %v959 = vsel %vm603, %v957, %v958
        %v961 = vadd.f32 %v917, %v959
        %s962 = sld [smem:[#allocation2 + $0x10f]]
        %v963 = vstv %s962
        %v964 = vmul.f32 %v750, %v963
        %v965 = vmul.f32 %v751, %v963
        %v968 = vrot.slane %v964, 2
        %v969 = vrot.slane %v965, 2
        %v970 = vsel %vm603, %v968, %v969
        %v972 = vadd.f32 %v928, %v970
        %s973 = sld [smem:[#allocation2 + $0x18f]]
        %v974 = vstv %s973
        %v975 = vmul.f32 %v750, %v974
        %v976 = vmul.f32 %v751, %v974
        %v979 = vrot.slane %v975, 2
        %v980 = vrot.slane %v976, 2
        %v981 = vsel %vm603, %v979, %v980
        %v983 = vadd.f32 %v939, %v981
        %s984 = sld [smem:[#allocation2 + $0x10]]
        %v985 = vstv %s984
        %v986 = vmul.f32 %v740, %v985
        %v987 = vmul.f32 %v741, %v985
        %v990 = vrot.slane %v986, 2
        %v991 = vrot.slane %v987, 2
        %v992 = vsel %vm603, %v990, %v991
        %v994 = vadd.f32 %v950, %v992
        %s995 = sld [smem:[#allocation2 + $0x90]]
        %v996 = vstv %s995
        %v997 = vmul.f32 %v740, %v996
        %v998 = vmul.f32 %v741, %v996
        %v1001 = vrot.slane %v997, 2
        %v1002 = vrot.slane %v998, 2
        %v1003 = vsel %vm603, %v1001, %v1002
        %v1005 = vadd.f32 %v961, %v1003
        %s1006 = sld [smem:[#allocation2 + $0x110]]
        %v1007 = vstv %s1006
        %v1008 = vmul.f32 %v740, %v1007
        %v1009 = vmul.f32 %v741, %v1007
        %v1012 = vrot.slane %v1008, 2
        %v1013 = vrot.slane %v1009, 2
        %v1014 = vsel %vm603, %v1012, %v1013
        %v1016 = vadd.f32 %v972, %v1014
        %s1017 = sld [smem:[#allocation2 + $0x190]]
        %v1018 = vstv %s1017
        %v1019 = vmul.f32 %v740, %v1018
        %v1020 = vmul.f32 %v741, %v1018
        %v1023 = vrot.slane %v1019, 2
        %v1024 = vrot.slane %v1020, 2
        %v1025 = vsel %vm603, %v1023, %v1024
        %v1027 = vadd.f32 %v983, %v1025
        %s1028 = sld [smem:[#allocation2 + $0x11]]
        %v1029 = vstv %s1028
        %v1030 = vmul.f32 %v758, %v1029
        %v1031 = vmul.f32 %v759, %v1029
        %v1034 = vrot.slane %v1030, 2
        %v1035 = vrot.slane %v1031, 2
        %v1036 = vsel %vm603, %v1034, %v1035
        %v1038 = vadd.f32 %v994, %v1036
        %s1039 = sld [smem:[#allocation2 + $0x91]]
        %v1040 = vstv %s1039
        %v1041 = vmul.f32 %v758, %v1040
        %v1042 = vmul.f32 %v759, %v1040
        %v1045 = vrot.slane %v1041, 2
        %v1046 = vrot.slane %v1042, 2
        %v1047 = vsel %vm603, %v1045, %v1046
        %v1049 = vadd.f32 %v1005, %v1047
        %s1050 = sld [smem:[#allocation2 + $0x111]]
        %v1051 = vstv %s1050
        %v1052 = vmul.f32 %v758, %v1051
        %v1053 = vmul.f32 %v759, %v1051
        %v1056 = vrot.slane %v1052, 2
        %v1057 = vrot.slane %v1053, 2
        %v1058 = vsel %vm603, %v1056, %v1057
        %v1060 = vadd.f32 %v1016, %v1058
        %s1061 = sld [smem:[#allocation2 + $0x191]]
        %v1062 = vstv %s1061
        %v1063 = vmul.f32 %v758, %v1062
        %v1064 = vmul.f32 %v759, %v1062
        %v1067 = vrot.slane %v1063, 2
        %v1068 = vrot.slane %v1064, 2
        %v1069 = vsel %vm603, %v1067, %v1068
        %v1071 = vadd.f32 %v1027, %v1069
        %v1072 = vld [vmem:[%s367 + $0x2] sm:$0x1]
        %s1073 = scalar_lea.vmem %s318, 16 [#allocation7]
        %v1074 = vld [vmem:[%s1073] sm:$0xff]
        %v1075 = vld [vmem:[%s375 + $0x2] sm:$0x1]
        %v1077 = vrot.slane %v1074, 7
        %v1080 = vrot.slane %v1075, 7
        %v1082 = vsel %vm393, %v1072, %v1077
        %v1083 = vsel %vm393, %v1077, %v1080
        %1086 = vrot.lane.b32.xlu0 %v1082, 1
        %v1087 = vpop.permute.xlu0 %1086
        %1088 = vrot.lane.b32.xlu0 %v1083, 1
        %v1089 = vpop.permute.xlu0 %1088
        %v1092 = vsel %vm404, 0.0, %v1087
        %v1093 = vsel %vm404, 0.0, %v1089
        %1094 = vrot.lane.b32.xlu0 %v1082, 127
        %v1095 = vpop.permute.xlu0 %1094
        %1096 = vrot.lane.b32.xlu0 %v1083, 127
        %v1097 = vpop.permute.xlu0 %1096
        %v1100 = vsel %vm413, %v1095, 0.0
        %v1101 = vsel %vm413, %v1097, 0.0
        %s1102 = sld [smem:[#allocation2 + $0x12]]
        %v1103 = vstv %s1102
        %v1104 = vmul.f32 %v1092, %v1103
        %v1105 = vadd.f32 %v1038, %v1104
        %s1106 = sld [smem:[#allocation2 + $0x92]]
        %v1107 = vstv %s1106
        %v1108 = vmul.f32 %v1092, %v1107
        %v1109 = vadd.f32 %v1049, %v1108
        %s1110 = sld [smem:[#allocation2 + $0x112]]
        %v1111 = vstv %s1110
        %v1112 = vmul.f32 %v1092, %v1111
        %v1113 = vadd.f32 %v1060, %v1112
        %s1114 = sld [smem:[#allocation2 + $0x192]]
        %v1115 = vstv %s1114
        %v1116 = vmul.f32 %v1092, %v1115
        %v1117 = vadd.f32 %v1071, %v1116
        %s1118 = sld [smem:[#allocation2 + $0x13]]
        %v1119 = vstv %s1118
        %v1120 = vmul.f32 %v1082, %v1119
        %v1121 = vadd.f32 %v1105, %v1120
        %s1122 = sld [smem:[#allocation2 + $0x93]]
        %v1123 = vstv %s1122
        %v1124 = vmul.f32 %v1082, %v1123
        %v1125 = vadd.f32 %v1109, %v1124
        %s1126 = sld [smem:[#allocation2 + $0x113]]
        %v1127 = vstv %s1126
        %v1128 = vmul.f32 %v1082, %v1127
        %v1129 = vadd.f32 %v1113, %v1128
        %s1130 = sld [smem:[#allocation2 + $0x193]]
        %v1131 = vstv %s1130
        %v1132 = vmul.f32 %v1082, %v1131
        %v1133 = vadd.f32 %v1117, %v1132
        %s1134 = sld [smem:[#allocation2 + $0x14]]
        %v1135 = vstv %s1134
        %v1136 = vmul.f32 %v1100, %v1135
        %v1137 = vadd.f32 %v1121, %v1136
        %s1138 = sld [smem:[#allocation2 + $0x94]]
        %v1139 = vstv %s1138
        %v1140 = vmul.f32 %v1100, %v1139
        %v1141 = vadd.f32 %v1125, %v1140
        %s1142 = sld [smem:[#allocation2 + $0x114]]
        %v1143 = vstv %s1142
        %v1144 = vmul.f32 %v1100, %v1143
        %v1145 = vadd.f32 %v1129, %v1144
        %s1146 = sld [smem:[#allocation2 + $0x194]]
        %v1147 = vstv %s1146
        %v1148 = vmul.f32 %v1100, %v1147
        %v1149 = vadd.f32 %v1133, %v1148
        %s1150 = sld [smem:[#allocation2 + $0x15]]
        %v1151 = vstv %s1150
        %v1152 = vmul.f32 %v1092, %v1151
        %v1153 = vmul.f32 %v1093, %v1151
        %v1156 = vrot.slane %v1152, 1
        %v1157 = vrot.slane %v1153, 1
        %v1158 = vsel %vm470, %v1156, %v1157
        %v1160 = vadd.f32 %v1137, %v1158
        %s1161 = sld [smem:[#allocation2 + $0x95]]
        %v1162 = vstv %s1161
        %v1163 = vmul.f32 %v1092, %v1162
        %v1164 = vmul.f32 %v1093, %v1162
        %v1167 = vrot.slane %v1163, 1
        %v1168 = vrot.slane %v1164, 1
        %v1169 = vsel %vm470, %v1167, %v1168
        %v1171 = vadd.f32 %v1141, %v1169
        %s1172 = sld [smem:[#allocation2 + $0x115]]
        %v1173 = vstv %s1172
        %v1174 = vmul.f32 %v1092, %v1173
        %v1175 = vmul.f32 %v1093, %v1173
        %v1178 = vrot.slane %v1174, 1
        %v1179 = vrot.slane %v1175, 1
        %v1180 = vsel %vm470, %v1178, %v1179
        %v1182 = vadd.f32 %v1145, %v1180
        %s1183 = sld [smem:[#allocation2 + $0x195]]
        %v1184 = vstv %s1183
        %v1185 = vmul.f32 %v1092, %v1184
        %v1186 = vmul.f32 %v1093, %v1184
        %v1189 = vrot.slane %v1185, 1
        %v1190 = vrot.slane %v1186, 1
        %v1191 = vsel %vm470, %v1189, %v1190
        %v1193 = vadd.f32 %v1149, %v1191
        %s1194 = sld [smem:[#allocation2 + $0x16]]
        %v1195 = vstv %s1194
        %v1196 = vmul.f32 %v1082, %v1195
        %v1197 = vmul.f32 %v1083, %v1195
        %v1200 = vrot.slane %v1196, 1
        %v1201 = vrot.slane %v1197, 1
        %v1202 = vsel %vm470, %v1200, %v1201
        %v1204 = vadd.f32 %v1160, %v1202
        %s1205 = sld [smem:[#allocation2 + $0x96]]
        %v1206 = vstv %s1205
        %v1207 = vmul.f32 %v1082, %v1206
        %v1208 = vmul.f32 %v1083, %v1206
        %v1211 = vrot.slane %v1207, 1
        %v1212 = vrot.slane %v1208, 1
        %v1213 = vsel %vm470, %v1211, %v1212
        %v1215 = vadd.f32 %v1171, %v1213
        %s1216 = sld [smem:[#allocation2 + $0x116]]
        %v1217 = vstv %s1216
        %v1218 = vmul.f32 %v1082, %v1217
        %v1219 = vmul.f32 %v1083, %v1217
        %v1222 = vrot.slane %v1218, 1
        %v1223 = vrot.slane %v1219, 1
        %v1224 = vsel %vm470, %v1222, %v1223
        %v1226 = vadd.f32 %v1182, %v1224
        %s1227 = sld [smem:[#allocation2 + $0x196]]
        %v1228 = vstv %s1227
        %v1229 = vmul.f32 %v1082, %v1228
        %v1230 = vmul.f32 %v1083, %v1228
        %v1233 = vrot.slane %v1229, 1
        %v1234 = vrot.slane %v1230, 1
        %v1235 = vsel %vm470, %v1233, %v1234
        %v1237 = vadd.f32 %v1193, %v1235
        %s1238 = sld [smem:[#allocation2 + $0x17]]
        %v1239 = vstv %s1238
        %v1240 = vmul.f32 %v1100, %v1239
        %v1241 = vmul.f32 %v1101, %v1239
        %v1244 = vrot.slane %v1240, 1
        %v1245 = vrot.slane %v1241, 1
        %v1246 = vsel %vm470, %v1244, %v1245
        %v1248 = vadd.f32 %v1204, %v1246
        %s1249 = sld [smem:[#allocation2 + $0x97]]
        %v1250 = vstv %s1249
        %v1251 = vmul.f32 %v1100, %v1250
        %v1252 = vmul.f32 %v1101, %v1250
        %v1255 = vrot.slane %v1251, 1
        %v1256 = vrot.slane %v1252, 1
        %v1257 = vsel %vm470, %v1255, %v1256
        %v1259 = vadd.f32 %v1215, %v1257
        %s1260 = sld [smem:[#allocation2 + $0x117]]
        %v1261 = vstv %s1260
        %v1262 = vmul.f32 %v1100, %v1261
        %v1263 = vmul.f32 %v1101, %v1261
        %v1266 = vrot.slane %v1262, 1
        %v1267 = vrot.slane %v1263, 1
        %v1268 = vsel %vm470, %v1266, %v1267
        %v1270 = vadd.f32 %v1226, %v1268
        %s1271 = sld [smem:[#allocation2 + $0x197]]
        %v1272 = vstv %s1271
        %v1273 = vmul.f32 %v1100, %v1272
        %v1274 = vmul.f32 %v1101, %v1272
        %v1277 = vrot.slane %v1273, 1
        %v1278 = vrot.slane %v1274, 1
        %v1279 = vsel %vm470, %v1277, %v1278
        %v1281 = vadd.f32 %v1237, %v1279
        %s1282 = sld [smem:[#allocation2 + $0x18]]
        %v1283 = vstv %s1282
        %v1284 = vmul.f32 %v1092, %v1283
        %v1285 = vmul.f32 %v1093, %v1283
        %v1288 = vrot.slane %v1284, 2
        %v1289 = vrot.slane %v1285, 2
        %v1290 = vsel %vm603, %v1288, %v1289
        %v1292 = vadd.f32 %v1248, %v1290
        %s1293 = sld [smem:[#allocation2 + $0x98]]
        %v1294 = vstv %s1293
        %v1295 = vmul.f32 %v1092, %v1294
        %v1296 = vmul.f32 %v1093, %v1294
        %v1299 = vrot.slane %v1295, 2
        %v1300 = vrot.slane %v1296, 2
        %v1301 = vsel %vm603, %v1299, %v1300
        %v1303 = vadd.f32 %v1259, %v1301
        %s1304 = sld [smem:[#allocation2 + $0x118]]
        %v1305 = vstv %s1304
        %v1306 = vmul.f32 %v1092, %v1305
        %v1307 = vmul.f32 %v1093, %v1305
        %v1310 = vrot.slane %v1306, 2
        %v1311 = vrot.slane %v1307, 2
        %v1312 = vsel %vm603, %v1310, %v1311
        %v1314 = vadd.f32 %v1270, %v1312
        %s1315 = sld [smem:[#allocation2 + $0x198]]
        %v1316 = vstv %s1315
        %v1317 = vmul.f32 %v1092, %v1316
        %v1318 = vmul.f32 %v1093, %v1316
        %v1321 = vrot.slane %v1317, 2
        %v1322 = vrot.slane %v1318, 2
        %v1323 = vsel %vm603, %v1321, %v1322
        %v1325 = vadd.f32 %v1281, %v1323
        %s1326 = sld [smem:[#allocation2 + $0x19]]
        %v1327 = vstv %s1326
        %v1328 = vmul.f32 %v1082, %v1327
        %v1329 = vmul.f32 %v1083, %v1327
        %v1332 = vrot.slane %v1328, 2
        %v1333 = vrot.slane %v1329, 2
        %v1334 = vsel %vm603, %v1332, %v1333
        %v1336 = vadd.f32 %v1292, %v1334
        %s1337 = sld [smem:[#allocation2 + $0x99]]
        %v1338 = vstv %s1337
        %v1339 = vmul.f32 %v1082, %v1338
        %v1340 = vmul.f32 %v1083, %v1338
        %v1343 = vrot.slane %v1339, 2
        %v1344 = vrot.slane %v1340, 2
        %v1345 = vsel %vm603, %v1343, %v1344
        %v1347 = vadd.f32 %v1303, %v1345
        %s1348 = sld [smem:[#allocation2 + $0x119]]
        %v1349 = vstv %s1348
        %v1350 = vmul.f32 %v1082, %v1349
        %v1351 = vmul.f32 %v1083, %v1349
        %v1354 = vrot.slane %v1350, 2
        %v1355 = vrot.slane %v1351, 2
        %v1356 = vsel %vm603, %v1354, %v1355
        %v1358 = vadd.f32 %v1314, %v1356
        %s1359 = sld [smem:[#allocation2 + $0x199]]
        %v1360 = vstv %s1359
        %v1361 = vmul.f32 %v1082, %v1360
        %v1362 = vmul.f32 %v1083, %v1360
        %v1365 = vrot.slane %v1361, 2
        %v1366 = vrot.slane %v1362, 2
        %v1367 = vsel %vm603, %v1365, %v1366
        %v1369 = vadd.f32 %v1325, %v1367
        %s1370 = sld [smem:[#allocation2 + $0x1a]]
        %v1371 = vstv %s1370
        %v1372 = vmul.f32 %v1100, %v1371
        %v1373 = vmul.f32 %v1101, %v1371
        %v1376 = vrot.slane %v1372, 2
        %v1377 = vrot.slane %v1373, 2
        %v1378 = vsel %vm603, %v1376, %v1377
        %v1380 = vadd.f32 %v1336, %v1378
        %s1381 = sld [smem:[#allocation2 + $0x9a]]
        %v1382 = vstv %s1381
        %v1383 = vmul.f32 %v1100, %v1382
        %v1384 = vmul.f32 %v1101, %v1382
        %v1387 = vrot.slane %v1383, 2
        %v1388 = vrot.slane %v1384, 2
        %v1389 = vsel %vm603, %v1387, %v1388
        %v1391 = vadd.f32 %v1347, %v1389
        %s1392 = sld [smem:[#allocation2 + $0x11a]]
        %v1393 = vstv %s1392
        %v1394 = vmul.f32 %v1100, %v1393
        %v1395 = vmul.f32 %v1101, %v1393
        %v1398 = vrot.slane %v1394, 2
        %v1399 = vrot.slane %v1395, 2
        %v1400 = vsel %vm603, %v1398, %v1399
        %v1402 = vadd.f32 %v1358, %v1400
        %s1403 = sld [smem:[#allocation2 + $0x19a]]
        %v1404 = vstv %s1403
        %v1405 = vmul.f32 %v1100, %v1404
        %v1406 = vmul.f32 %v1101, %v1404
        %v1409 = vrot.slane %v1405, 2
        %v1410 = vrot.slane %v1406, 2
        %v1411 = vsel %vm603, %v1409, %v1410
        %v1413 = vadd.f32 %v1369, %v1411
        %v1414 = vld [vmem:[%s367 + $0x3] sm:$0x1]
        %s1415 = scalar_lea.vmem %s318, 24 [#allocation7]
        %v1416 = vld [vmem:[%s1415] sm:$0xff]
        %v1417 = vld [vmem:[%s375 + $0x3] sm:$0x1]
        %v1419 = vrot.slane %v1416, 7
        %v1422 = vrot.slane %v1417, 7
        %v1424 = vsel %vm393, %v1414, %v1419
        %v1425 = vsel %vm393, %v1419, %v1422
        %1428 = vrot.lane.b32.xlu0 %v1424, 1
        %v1429 = vpop.permute.xlu0 %1428
        %1430 = vrot.lane.b32.xlu0 %v1425, 1
        %v1431 = vpop.permute.xlu0 %1430
        %v1434 = vsel %vm404, 0.0, %v1429
        %v1435 = vsel %vm404, 0.0, %v1431
        %1436 = vrot.lane.b32.xlu0 %v1424, 127
        %v1437 = vpop.permute.xlu0 %1436
        %1438 = vrot.lane.b32.xlu0 %v1425, 127
        %v1439 = vpop.permute.xlu0 %1438
        %v1442 = vsel %vm413, %v1437, 0.0
        %v1443 = vsel %vm413, %v1439, 0.0
        %s1444 = sld [smem:[#allocation2 + $0x1b]]
        %v1445 = vstv %s1444
        %v1446 = vmul.f32 %v1434, %v1445
        %v1447 = vadd.f32 %v1380, %v1446
        %s1448 = sld [smem:[#allocation2 + $0x9b]]
        %v1449 = vstv %s1448
        %v1450 = vmul.f32 %v1434, %v1449
        %v1451 = vadd.f32 %v1391, %v1450
        %s1452 = sld [smem:[#allocation2 + $0x11b]]
        %v1453 = vstv %s1452
        %v1454 = vmul.f32 %v1434, %v1453
        %v1455 = vadd.f32 %v1402, %v1454
        %s1456 = sld [smem:[#allocation2 + $0x19b]]
        %v1457 = vstv %s1456
        %v1458 = vmul.f32 %v1434, %v1457
        %v1459 = vadd.f32 %v1413, %v1458
        %s1460 = sld [smem:[#allocation2 + $0x1c]]
        %v1461 = vstv %s1460
        %v1462 = vmul.f32 %v1424, %v1461
        %v1463 = vadd.f32 %v1447, %v1462
        %s1464 = sld [smem:[#allocation2 + $0x9c]]
        %v1465 = vstv %s1464
        %v1466 = vmul.f32 %v1424, %v1465
        %v1467 = vadd.f32 %v1451, %v1466
        %s1468 = sld [smem:[#allocation2 + $0x11c]]
        %v1469 = vstv %s1468
        %v1470 = vmul.f32 %v1424, %v1469
        %v1471 = vadd.f32 %v1455, %v1470
        %s1472 = sld [smem:[#allocation2 + $0x19c]]
        %v1473 = vstv %s1472
        %v1474 = vmul.f32 %v1424, %v1473
        %v1475 = vadd.f32 %v1459, %v1474
        %s1476 = sld [smem:[#allocation2 + $0x1d]]
        %v1477 = vstv %s1476
        %v1478 = vmul.f32 %v1442, %v1477
        %v1479 = vadd.f32 %v1463, %v1478
        %s1480 = sld [smem:[#allocation2 + $0x9d]]
        %v1481 = vstv %s1480
        %v1482 = vmul.f32 %v1442, %v1481
        %v1483 = vadd.f32 %v1467, %v1482
        %s1484 = sld [smem:[#allocation2 + $0x11d]]
        %v1485 = vstv %s1484
        %v1486 = vmul.f32 %v1442, %v1485
        %v1487 = vadd.f32 %v1471, %v1486
        %s1488 = sld [smem:[#allocation2 + $0x19d]]
        %v1489 = vstv %s1488
        %v1490 = vmul.f32 %v1442, %v1489
        %v1491 = vadd.f32 %v1475, %v1490
        %s1492 = sld [smem:[#allocation2 + $0x1e]]
        %v1493 = vstv %s1492
        %v1494 = vmul.f32 %v1434, %v1493
        %v1495 = vmul.f32 %v1435, %v1493
        %v1498 = vrot.slane %v1494, 1
        %v1499 = vrot.slane %v1495, 1
        %v1500 = vsel %vm470, %v1498, %v1499
        %v1502 = vadd.f32 %v1479, %v1500
        %s1503 = sld [smem:[#allocation2 + $0x9e]]
        %v1504 = vstv %s1503
        %v1505 = vmul.f32 %v1434, %v1504
        %v1506 = vmul.f32 %v1435, %v1504
        %v1509 = vrot.slane %v1505, 1
        %v1510 = vrot.slane %v1506, 1
        %v1511 = vsel %vm470, %v1509, %v1510
        %v1513 = vadd.f32 %v1483, %v1511
        %s1514 = sld [smem:[#allocation2 + $0x11e]]
        %v1515 = vstv %s1514
        %v1516 = vmul.f32 %v1434, %v1515
        %v1517 = vmul.f32 %v1435, %v1515
        %v1520 = vrot.slane %v1516, 1
        %v1521 = vrot.slane %v1517, 1
        %v1522 = vsel %vm470, %v1520, %v1521
        %v1524 = vadd.f32 %v1487, %v1522
        %s1525 = sld [smem:[#allocation2 + $0x19e]]
        %v1526 = vstv %s1525
        %v1527 = vmul.f32 %v1434, %v1526
        %v1528 = vmul.f32 %v1435, %v1526
        %v1531 = vrot.slane %v1527, 1
        %v1532 = vrot.slane %v1528, 1
        %v1533 = vsel %vm470, %v1531, %v1532
        %v1535 = vadd.f32 %v1491, %v1533
        %s1536 = sld [smem:[#allocation2 + $0x1f]]
        %v1537 = vstv %s1536
        %v1538 = vmul.f32 %v1424, %v1537
        %v1539 = vmul.f32 %v1425, %v1537
        %v1542 = vrot.slane %v1538, 1
        %v1543 = vrot.slane %v1539, 1
        %v1544 = vsel %vm470, %v1542, %v1543
        %v1546 = vadd.f32 %v1502, %v1544
        %s1547 = sld [smem:[#allocation2 + $0x9f]]
        %v1548 = vstv %s1547
        %v1549 = vmul.f32 %v1424, %v1548
        %v1550 = vmul.f32 %v1425, %v1548
        %v1553 = vrot.slane %v1549, 1
        %v1554 = vrot.slane %v1550, 1
        %v1555 = vsel %vm470, %v1553, %v1554
        %v1557 = vadd.f32 %v1513, %v1555
        %s1558 = sld [smem:[#allocation2 + $0x11f]]
        %v1559 = vstv %s1558
        %v1560 = vmul.f32 %v1424, %v1559
        %v1561 = vmul.f32 %v1425, %v1559
        %v1564 = vrot.slane %v1560, 1
        %v1565 = vrot.slane %v1561, 1
        %v1566 = vsel %vm470, %v1564, %v1565
        %v1568 = vadd.f32 %v1524, %v1566
        %s1569 = sld [smem:[#allocation2 + $0x19f]]
        %v1570 = vstv %s1569
        %v1571 = vmul.f32 %v1424, %v1570
        %v1572 = vmul.f32 %v1425, %v1570
        %v1575 = vrot.slane %v1571, 1
        %v1576 = vrot.slane %v1572, 1
        %v1577 = vsel %vm470, %v1575, %v1576
        %v1579 = vadd.f32 %v1535, %v1577
        %s1580 = sld [smem:[#allocation2 + $0x20]]
        %v1581 = vstv %s1580
        %v1582 = vmul.f32 %v1442, %v1581
        %v1583 = vmul.f32 %v1443, %v1581
        %v1586 = vrot.slane %v1582, 1
        %v1587 = vrot.slane %v1583, 1
        %v1588 = vsel %vm470, %v1586, %v1587
        %v1590 = vadd.f32 %v1546, %v1588
        %s1591 = sld [smem:[#allocation2 + $0xa0]]
        %v1592 = vstv %s1591
        %v1593 = vmul.f32 %v1442, %v1592
        %v1594 = vmul.f32 %v1443, %v1592
        %v1597 = vrot.slane %v1593, 1
        %v1598 = vrot.slane %v1594, 1
        %v1599 = vsel %vm470, %v1597, %v1598
        %v1601 = vadd.f32 %v1557, %v1599
        %s1602 = sld [smem:[#allocation2 + $0x120]]
        %v1603 = vstv %s1602
        %v1604 = vmul.f32 %v1442, %v1603
        %v1605 = vmul.f32 %v1443, %v1603
        %v1608 = vrot.slane %v1604, 1
        %v1609 = vrot.slane %v1605, 1
        %v1610 = vsel %vm470, %v1608, %v1609
        %v1612 = vadd.f32 %v1568, %v1610
        %s1613 = sld [smem:[#allocation2 + $0x1a0]]
        %v1614 = vstv %s1613
        %v1615 = vmul.f32 %v1442, %v1614
        %v1616 = vmul.f32 %v1443, %v1614
        %v1619 = vrot.slane %v1615, 1
        %v1620 = vrot.slane %v1616, 1
        %v1621 = vsel %vm470, %v1619, %v1620
        %v1623 = vadd.f32 %v1579, %v1621
        %s1624 = sld [smem:[#allocation2 + $0x21]]
        %v1625 = vstv %s1624
        %v1626 = vmul.f32 %v1434, %v1625
        %v1627 = vmul.f32 %v1435, %v1625
        %v1630 = vrot.slane %v1626, 2
        %v1631 = vrot.slane %v1627, 2
        %v1632 = vsel %vm603, %v1630, %v1631
        %v1634 = vadd.f32 %v1590, %v1632
        %s1635 = sld [smem:[#allocation2 + $0xa1]]
        %v1636 = vstv %s1635
        %v1637 = vmul.f32 %v1434, %v1636
        %v1638 = vmul.f32 %v1435, %v1636
        %v1641 = vrot.slane %v1637, 2
        %v1642 = vrot.slane %v1638, 2
        %v1643 = vsel %vm603, %v1641, %v1642
        %v1645 = vadd.f32 %v1601, %v1643
        %s1646 = sld [smem:[#allocation2 + $0x121]]
        %v1647 = vstv %s1646
        %v1648 = vmul.f32 %v1434, %v1647
        %v1649 = vmul.f32 %v1435, %v1647
        %v1652 = vrot.slane %v1648, 2
        %v1653 = vrot.slane %v1649, 2
        %v1654 = vsel %vm603, %v1652, %v1653
        %v1656 = vadd.f32 %v1612, %v1654
        %s1657 = sld [smem:[#allocation2 + $0x1a1]]
        %v1658 = vstv %s1657
        %v1659 = vmul.f32 %v1434, %v1658
        %v1660 = vmul.f32 %v1435, %v1658
        %v1663 = vrot.slane %v1659, 2
        %v1664 = vrot.slane %v1660, 2
        %v1665 = vsel %vm603, %v1663, %v1664
        %v1667 = vadd.f32 %v1623, %v1665
        %s1668 = sld [smem:[#allocation2 + $0x22]]
        %v1669 = vstv %s1668
        %v1670 = vmul.f32 %v1424, %v1669
        %v1671 = vmul.f32 %v1425, %v1669
        %v1674 = vrot.slane %v1670, 2
        %v1675 = vrot.slane %v1671, 2
        %v1676 = vsel %vm603, %v1674, %v1675
        %v1678 = vadd.f32 %v1634, %v1676
        %s1679 = sld [smem:[#allocation2 + $0xa2]]
        %v1680 = vstv %s1679
        %v1681 = vmul.f32 %v1424, %v1680
        %v1682 = vmul.f32 %v1425, %v1680
        %v1685 = vrot.slane %v1681, 2
        %v1686 = vrot.slane %v1682, 2
        %v1687 = vsel %vm603, %v1685, %v1686
        %v1689 = vadd.f32 %v1645, %v1687
        %s1690 = sld [smem:[#allocation2 + $0x122]]
        %v1691 = vstv %s1690
        %v1692 = vmul.f32 %v1424, %v1691
        %v1693 = vmul.f32 %v1425, %v1691
        %v1696 = vrot.slane %v1692, 2
        %v1697 = vrot.slane %v1693, 2
        %v1698 = vsel %vm603, %v1696, %v1697
        %v1700 = vadd.f32 %v1656, %v1698
        %s1701 = sld [smem:[#allocation2 + $0x1a2]]
        %v1702 = vstv %s1701
        %v1703 = vmul.f32 %v1424, %v1702
        %v1704 = vmul.f32 %v1425, %v1702
        %v1707 = vrot.slane %v1703, 2
        %v1708 = vrot.slane %v1704, 2
        %v1709 = vsel %vm603, %v1707, %v1708
        %v1711 = vadd.f32 %v1667, %v1709
        %s1712 = sld [smem:[#allocation2 + $0x23]]
        %v1713 = vstv %s1712
        %v1714 = vmul.f32 %v1442, %v1713
        %v1715 = vmul.f32 %v1443, %v1713
        %v1718 = vrot.slane %v1714, 2
        %v1719 = vrot.slane %v1715, 2
        %v1720 = vsel %vm603, %v1718, %v1719
        %v1722 = vadd.f32 %v1678, %v1720
        %s1723 = sld [smem:[#allocation2 + $0xa3]]
        %v1724 = vstv %s1723
        %v1725 = vmul.f32 %v1442, %v1724
        %v1726 = vmul.f32 %v1443, %v1724
        %v1729 = vrot.slane %v1725, 2
        %v1730 = vrot.slane %v1726, 2
        %v1731 = vsel %vm603, %v1729, %v1730
        %v1733 = vadd.f32 %v1689, %v1731
        %s1734 = sld [smem:[#allocation2 + $0x123]]
        %v1735 = vstv %s1734
        %v1736 = vmul.f32 %v1442, %v1735
        %v1737 = vmul.f32 %v1443, %v1735
        %v1740 = vrot.slane %v1736, 2
        %v1741 = vrot.slane %v1737, 2
        %v1742 = vsel %vm603, %v1740, %v1741
        %v1744 = vadd.f32 %v1700, %v1742
        %s1745 = sld [smem:[#allocation2 + $0x1a3]]
        %v1746 = vstv %s1745
        %v1747 = vmul.f32 %v1442, %v1746
        %v1748 = vmul.f32 %v1443, %v1746
        %v1751 = vrot.slane %v1747, 2
        %v1752 = vrot.slane %v1748, 2
        %v1753 = vsel %vm603, %v1751, %v1752
        %v1755 = vadd.f32 %v1711, %v1753
        %vm1756 = vcmask 130048
        %1757 = vst.msk [vmem:[%s359] sm:$0xff] %vm1756, %v1722
        %s1758 = scalar_lea.vmem %s359, 8 [#allocation8]
        %1759 = vst.msk [vmem:[%s1758] sm:$0xff] %vm1756, %v1733
        %s1760 = scalar_lea.vmem %s359, 16 [#allocation8]
        %1761 = vst.msk [vmem:[%s1760] sm:$0xff] %vm1756, %v1744
        %s1762 = scalar_lea.vmem %s359, 24 [#allocation8]
        %1763 = vst.msk [vmem:[%s1762] sm:$0xff] %vm1756, %v1755
        %s1764 = sand.u32 %s169, 1
        %s1765 = scalar_lea.sflag [#allocation3], %s1764
        %s1766 = sand.u32 %s169, 1
        %s1767 = smul.addr %s1766, 32
        %s1768 = scalar_lea.vmem [#allocation8], %s1767
        // Predicated region
        $region87: #{repsrb_forward.1} parent=73 // pred_check
          %p1769 = pneg %p179
        $region88: #{repsrb_forward.1} parent=73 // pred_check_branch
          %1771 = sbr.rel (%p1769) target = $region90
        $region89: #{repsrb_forward.1} parent=73 // pred_region
          %s1773 = ssub.s32 512, 512
          %1774 = vsyncadd %s1765, %s1773
          %s1775 = smul.addr %s25, 8
          %s1776 = sadd.s32 %s26, %s1775
          %s1777 = smul.addr %s1776, 128
          %s1778 = scalar_lea.hbm %s5, %s1777
          %s1779 = sshll.u32 %s1768, 4
          %s1780 = int_to_ptr.vmem [resolvable:$true] %s1779
          %1785 = dma.vmem_to_hbm [thread:$0]  %s1780, 512, %s1778, %s1765, 128, 256, 8
        $region90: #{repsrb_forward.1} parent=73 // pred_fallthru
          _
      $region74: #{repsrb_forward.1} parent=5 // pred_fallthru
        _
      %p1786 = scmp.le.s32.totalorder 2, %s16
      // Predicated region
      $region91: #{repsrb_forward.1} parent=5 // pred_check
        %p1787 = pneg %p1786
      $region92: #{repsrb_forward.1} parent=5 // pred_check_branch
        %1789 = sbr.rel (%p1787) target = $region94
      $region93: #{repsrb_forward.1} parent=5 // pred_region
        %s1790 = ssub.s32 %s16, 2
        // Predicated region
        $region95: #{repsrb_forward.1} parent=93 // pred_check
          %p1791 = pneg %p185
        $region96: #{repsrb_forward.1} parent=93 // pred_check_branch
          %1793 = sbr.rel (%p1791) target = $region98
        $region97: #{repsrb_forward.1} parent=93 // pred_region
          %s1794 = sand.u32 %s170, 1
          %s1795 = scalar_lea.sflag [#allocation3], %s1794
          %s1796 = sand.u32 %s170, 1
          %s1797 = smul.addr %s1796, 32
          %s1798 = scalar_lea.vmem [#allocation8], %s1797
          %1799 = dma.done %s1795, 512
        $region98: #{repsrb_forward.1} parent=93 // pred_fallthru
          _
      $region94: #{repsrb_forward.1} parent=5 // pred_fallthru
        _
    $region6: #{repsrb_forward.1} parent=1 // loop_footer
      %s20 = sadd.s32 1, %s16
    $region7: #{repsrb_forward.1} parent=1 // loop_footer_branch
      %15 = sbr.rel target = $region3
    $region8: #{repsrb_forward.1} parent=1 // loop_exit
      _
    %1800 = vsyncpa [#allocation3], 1
    %s1801 = scalar_lea.sflag [#allocation3], 1
    %1802 = vsyncpa %s1801, 1
    %1803 = vsyncpa [#allocation4], 1
    %s1804 = scalar_lea.sflag [#allocation4], 1
    %1805 = vsyncpa %s1804, 1
    %1806 = vsyncpa [#allocation6], 1

</llo_original>
